<compile_context>
chip_gen: v5e
topology: v5e:2x2
jax: 0.10.0
libtpu: 0.0.40
codegen_flags: <defaults>
</compile_context>

<pallas_src>
import jax
import jax.numpy as jnp
import numpy as np
from jax import lax
from jax.experimental import pallas as pl
from jax.experimental.pallas import tpu as pltpu

EPS = 1e-5


def _conv_head(xf, w_ref, bgb_ref, mask_ref, pool_ref):
    """3x [Conv1d(k=2) -> BatchNorm1d(train) -> ReLU] -> AdaptiveAvgPool1d(1).

    xf:       (B*L, H)    channels-last, flat rows (row = b*L + t), fixed shape.
    w_ref:    (3, 2H, H)  pre-concatenated conv taps [W0; W1] per layer.
    bgb_ref:  (9, H)      rows 0-2 bias, 3-5 gamma, 6-8 beta.
    mask_ref: (3, B*L, 1) 1.0 on rows that are valid outputs of layer i.
    pool_ref: (B, B*L)    avg-pool selector (1/(L-3) on final valid rows).
    """
    BL, H = xf.shape
    B = pool_ref.shape[0]
    L = BL // B
    for i in range(3):
        # k=2 im2col: pair row r with row r+1 (wrap / cross-batch rows are garbage
        # but finite, and masked out of the BN stats and the pool below).
        shifted = jnp.concatenate([xf[1:, :], xf[:1, :]], axis=0)        # (BL, H)
        x2 = jnp.concatenate([xf, shifted], axis=-1)                     # (BL, 2H)
        y = jnp.dot(x2, w_ref[i], preferred_element_type=jnp.float32)
        y = y + bgb_ref[i][None, :]
        # BatchNorm1d (training): biased stats over the valid (batch, length) rows.
        mask = mask_ref[i]                                               # (BL, 1)
        inv_n = 1.0 / (B * (L - 1 - i))
        mean = jnp.sum(y * mask, axis=0, keepdims=True) * inv_n
        d = y - mean
        var = jnp.sum(d * d * mask, axis=0, keepdims=True) * inv_n
        yn = d * lax.rsqrt(var + EPS) * bgb_ref[3 + i][None, :] + bgb_ref[6 + i][None, :]
        xf = jnp.maximum(yn, 0.0)
    # AdaptiveAvgPool1d(1) + Flatten as one selector matmul -> (B, H).
    return jnp.dot(pool_ref[...], xf, preferred_element_type=jnp.float32)


def three_inputs_kernel(
    title_ref, full_ref, cat_ref,
    tw_ref, tbgb_ref, tmask_ref, tpool_ref,
    fw_ref, fbgb_ref, fmask_ref, fpool_ref,
    c1w_ref, c2w_ref, c3w_ref, chb_ref, cbgb_ref,
    iw_ref, ib_ref, fnw_ref, fnb_ref,
    out_ref,
):
    # Title / full conv heads (each -> (B, H)).
    title = _conv_head(title_ref[...], tw_ref, tbgb_ref, tmask_ref, tpool_ref)
    full = _conv_head(full_ref[...], fw_ref, fbgb_ref, fmask_ref, fpool_ref)

    # Category MLP: Linear -> ReLU -> Linear -> BN(train) -> ReLU -> Linear.
    c = cat_ref[...]
    h1 = jnp.maximum(
        jnp.dot(c, c1w_ref[...], preferred_element_type=jnp.float32) + chb_ref[0][None, :],
        0.0)
    h2 = jnp.dot(h1, c2w_ref[...], preferred_element_type=jnp.float32) + cbgb_ref[0][None, :]
    mean = jnp.mean(h2, axis=0, keepdims=True)
    d = h2 - mean
    var = jnp.mean(d * d, axis=0, keepdims=True)
    h2 = jnp.maximum(
        d * lax.rsqrt(var + EPS) * cbgb_ref[1][None, :] + cbgb_ref[2][None, :], 0.0)
    category = jnp.dot(h2, c3w_ref[...], preferred_element_type=jnp.float32) + chb_ref[1][None, :]

    # Concatenate features and run the two dense layers + final ReLU.
    concatenated = jnp.concatenate([title, full, category], axis=1)       # (B, 3H)
    inter = jnp.dot(concatenated, iw_ref[...],
                    preferred_element_type=jnp.float32) + ib_ref[...]     # (B, 2H)
    final = jnp.dot(inter, fnw_ref[...],
                    preferred_element_type=jnp.float32) + fnb_ref[...]    # (B, 1)
    out_ref[...] = jnp.maximum(final, 0.0)


def _pack_head(w0, w1, b, g, be, B, L):
    """Pack one conv head's params + static masks/pool selector (JAX/NumPy glue)."""
    w = jnp.concatenate([w0, w1], axis=1)                    # (3, 2H, H): [tap0; tap1]
    bgb = jnp.concatenate([b, g, be], axis=0)                # (9, H)
    t = np.arange(L)
    m = np.stack([(t < (L - 1 - i)) for i in range(3)]).astype(np.float32)   # (3, L)
    masks = np.tile(m[:, None, :], (1, B, 1)).reshape(3, B * L, 1)
    lf = L - 3
    pool = np.zeros((B, B * L), np.float32)
    for bb in range(B):
        pool[bb, bb * L: bb * L + lf] = 1.0 / lf
    return w, bgb, jnp.asarray(masks), jnp.asarray(pool)


def three_inputs_net(input1, input2, input3, params):
    """input1/input2: int32 token ids (B, L); input3: float32 (B, n_cat)."""
    B, Lt = input1.shape
    _, Lf = input2.shape
    hid = params["title_emb"].shape[1]

    # Embedding lookups (gather) stay in JAX glue; fed channels-last, flat (B*L, H).
    title_x = jnp.take(params["title_emb"], input1, axis=0).astype(jnp.float32)
    full_x = jnp.take(params["full_emb"], input2, axis=0).astype(jnp.float32)
    title_x = title_x.reshape(B * Lt, hid)
    full_x = full_x.reshape(B * Lf, hid)

    t_w, t_bgb, t_mask, t_pool = _pack_head(
        params["t_w0"], params["t_w1"], params["t_b"], params["t_g"], params["t_be"], B, Lt)
    f_w, f_bgb, f_mask, f_pool = _pack_head(
        params["f_w0"], params["f_w1"], params["f_b"], params["f_g"], params["f_be"], B, Lf)
    c_hb = jnp.concatenate([params["c1_b"], params["c3_b"]], axis=0)                # (2, H)
    c_bgb = jnp.concatenate([params["c2_b"], params["c_g"], params["c_be"]], axis=0)  # (3, 10H)

    args = (
        title_x, full_x, input3.astype(jnp.float32),
        t_w, t_bgb, t_mask, t_pool,
        f_w, f_bgb, f_mask, f_pool,
        params["c1_w"], params["c2_w"], params["c3_w"], c_hb, c_bgb,
        params["i_w"], params["i_b"], params["fn_w"], params["fn_b"],
    )
    in_specs = [pl.BlockSpec(memory_space=pltpu.MemorySpace.VMEM) for _ in args]
    out_specs = pl.BlockSpec(memory_space=pltpu.MemorySpace.VMEM)

    return pl.pallas_call(
        three_inputs_kernel,
        out_shape=jax.ShapeDtypeStruct((B, 1), jnp.float32),
        in_specs=in_specs,
        out_specs=out_specs,
    )(*args)


# ---------------- pure-JAX reference (same math, no Pallas) ----------------
def _ref_head(x, w0, w1, b, g, be):
    B, L, H = x.shape
    for i in range(3):
        Lo = L - 1
        y = x[:, :Lo, :] @ w0[i] + x[:, 1:, :] @ w1[i] + b[i][None, None, :]
        yf = y.reshape(B * Lo, H)
        mean = yf.mean(axis=0, keepdims=True)
        var = ((yf - mean) ** 2).mean(axis=0, keepdims=True)
        yf = (yf - mean) / jnp.sqrt(var + EPS) * g[i] + be[i]
        x = jnp.maximum(yf, 0.0).reshape(B, Lo, H)
        L = Lo
    return x.mean(axis=1)


def three_inputs_net_ref(input1, input2, input3, p):
    title = _ref_head(jnp.take(p["title_emb"], input1, axis=0),
                      p["t_w0"], p["t_w1"], p["t_b"], p["t_g"], p["t_be"])
    full = _ref_head(jnp.take(p["full_emb"], input2, axis=0),
                     p["f_w0"], p["f_w1"], p["f_b"], p["f_g"], p["f_be"])
    h1 = jnp.maximum(input3 @ p["c1_w"] + p["c1_b"], 0.0)
    h2 = h1 @ p["c2_w"] + p["c2_b"]
    mean = h2.mean(axis=0, keepdims=True)
    var = ((h2 - mean) ** 2).mean(axis=0, keepdims=True)
    h2 = jnp.maximum((h2 - mean) / jnp.sqrt(var + EPS) * p["c_g"] + p["c_be"], 0.0)
    category = h2 @ p["c3_w"] + p["c3_b"]
    cc = jnp.concatenate([title, full, category], axis=1)
    inter = cc @ p["i_w"] + p["i_b"]
    return jnp.maximum(inter @ p["fn_w"] + p["fn_b"], 0.0)


def init_params(key, n_tokens, n_cat, hid):
    ks = jax.random.split(key, 32)
    k = iter(ks)

    def rnd(shape, scale=0.1):
        return (scale * jax.random.normal(next(k), shape)).astype(jnp.float32)

    params = {
        "title_emb": rnd((n_tokens, hid)),
        "full_emb": rnd((n_tokens, hid)),
        # conv heads: W0/W1 of shape (3, H_in, H_out) == transposed taps of the
        # PyTorch (out, in, k=2) conv weights; b/gamma/beta of shape (3, H).
        "t_w0": rnd((3, hid, hid)), "t_w1": rnd((3, hid, hid)),
        "t_b": rnd((3, hid)),
        "t_g": 1.0 + rnd((3, hid)), "t_be": rnd((3, hid)),
        "f_w0": rnd((3, hid, hid)), "f_w1": rnd((3, hid, hid)),
        "f_b": rnd((3, hid)),
        "f_g": 1.0 + rnd((3, hid)), "f_be": rnd((3, hid)),
        # category MLP (Linear weights stored transposed: (in, out)).
        "c1_w": rnd((n_cat, hid)), "c1_b": rnd((1, hid)),
        "c2_w": rnd((hid, 10 * hid)), "c2_b": rnd((1, 10 * hid)),
        "c_g": 1.0 + rnd((1, 10 * hid)), "c_be": rnd((1, 10 * hid)),
        "c3_w": rnd((10 * hid, hid)), "c3_b": rnd((1, hid)),
        # inter / final dense.
        "i_w": rnd((3 * hid, 2 * hid)), "i_b": rnd((1, 2 * hid)),
        "fn_w": rnd((2 * hid, 1)), "fn_b": rnd((1, 1)),
    }
    return params


if __name__ == "__main__":
    B = 4
    HID = 32
    N_TOKENS = 50
    N_CAT = 16
    L_TITLE = 8
    L_FULL = 12
    # concat_number_of_features = 3 * HID (title + full + category outputs)

    key = jax.random.PRNGKey(0)
    k_p, k1, k2, k3 = jax.random.split(key, 4)

    params = init_params(k_p, N_TOKENS, N_CAT, HID)
    input1 = jax.random.randint(k1, (B, L_TITLE), 0, N_TOKENS, dtype=jnp.int32)
    input2 = jax.random.randint(k2, (B, L_FULL), 0, N_TOKENS, dtype=jnp.int32)
    input3 = jax.random.normal(k3, (B, N_CAT), dtype=jnp.float32)

    out = jax.block_until_ready(three_inputs_net(input1, input2, input3, params))
    ref = jax.block_until_ready(three_inputs_net_ref(input1, input2, input3, params))

    assert out.shape == (B, 1), out.shape
    np.testing.assert_allclose(np.asarray(out), np.asarray(ref), rtol=1e-4, atol=1e-4)
    print("KERNEL_OK")
</pallas_src>

<mosaic_0001>
module attributes {stable_mosaic.version = 11 : i64} {
  func.func @three_inputs_kernel(%arg0: memref<32x32xf32, #tpu.memory_space<vmem>>, %arg1: memref<48x32xf32, #tpu.memory_space<vmem>>, %arg2: memref<4x16xf32, #tpu.memory_space<vmem>>, %arg3: memref<3x64x32xf32, #tpu.memory_space<vmem>>, %arg4: memref<9x32xf32, #tpu.memory_space<vmem>>, %arg5: memref<3x32x1xf32, #tpu.memory_space<vmem>>, %arg6: memref<4x32xf32, #tpu.memory_space<vmem>>, %arg7: memref<3x64x32xf32, #tpu.memory_space<vmem>>, %arg8: memref<9x32xf32, #tpu.memory_space<vmem>>, %arg9: memref<3x48x1xf32, #tpu.memory_space<vmem>>, %arg10: memref<4x48xf32, #tpu.memory_space<vmem>>, %arg11: memref<16x32xf32, #tpu.memory_space<vmem>>, %arg12: memref<32x320xf32, #tpu.memory_space<vmem>>, %arg13: memref<320x32xf32, #tpu.memory_space<vmem>>, %arg14: memref<2x32xf32, #tpu.memory_space<vmem>>, %arg15: memref<3x320xf32, #tpu.memory_space<vmem>>, %arg16: memref<96x64xf32, #tpu.memory_space<vmem>>, %arg17: memref<1x64xf32, #tpu.memory_space<vmem>>, %arg18: memref<64x1xf32, #tpu.memory_space<vmem>>, %arg19: memref<1x1xf32, #tpu.memory_space<vmem>>, %arg20: memref<4x1xf32, #tpu.memory_space<vmem>>) attributes {dimension_semantics = [], scalar_prefetch = 0 : i64, scratch_operands = 0 : i64, tpu.core_type = #tpu.core_type<tc>} {
    %c0 = arith.constant 0 : index
    %c0_0 = arith.constant 0 : index
    %0 = vector.load %arg0[%c0, %c0_0] : memref<32x32xf32, #tpu.memory_space<vmem>>, vector<32x32xf32>
    %1 = vector.extract_strided_slice %0 {offsets = [1, 0], sizes = [31, 32], strides = [1, 1]} : vector<32x32xf32> to vector<31x32xf32>
    %2 = vector.extract_strided_slice %0 {offsets = [0, 0], sizes = [1, 32], strides = [1, 1]} : vector<32x32xf32> to vector<1x32xf32>
    %3 = tpu.concatenate %1, %2 in 0 : vector<31x32xf32>, vector<1x32xf32> -> vector<32x32xf32>
    %4 = tpu.concatenate %0, %3 in 1 : vector<32x32xf32>, vector<32x32xf32> -> vector<32x64xf32>
    %c0_1 = arith.constant 0 : index
    %c0_2 = arith.constant 0 : index
    %c0_3 = arith.constant 0 : index
    %5 = vector.load %arg3[%c0_1, %c0_2, %c0_3] : memref<3x64x32xf32, #tpu.memory_space<vmem>>, vector<1x64x32xf32>
    %6 = vector.shape_cast %5 : vector<1x64x32xf32> to vector<64x32xf32>
    %cst = arith.constant dense<0.000000e+00> : vector<32x32xf32>
    %7 = tpu.matmul %4, %6, %cst {dimension_numbers = #tpu.dot_dimension_numbers<[1], [0], [0], [1], [0, 0, 1, 1], [], []>} : vector<32x64xf32>, vector<64x32xf32>, vector<32x32xf32> -> vector<32x32xf32>
    %c0_4 = arith.constant 0 : index
    %c0_5 = arith.constant 0 : index
    %8 = vector.load %arg4[%c0_4, %c0_5] : memref<9x32xf32, #tpu.memory_space<vmem>>, vector<1x32xf32>
    %9 = vector.shape_cast %8 : vector<1x32xf32> to vector<32xf32>
    %10 = vector.shape_cast %9 : vector<32xf32> to vector<1x32xf32>
    %11 = vector.broadcast %10 : vector<1x32xf32> to vector<32x32xf32>
    %12 = arith.addf %7, %11 : vector<32x32xf32>
    %c0_6 = arith.constant 0 : index
    %c0_7 = arith.constant 0 : index
    %c0_8 = arith.constant 0 : index
    %13 = vector.load %arg5[%c0_6, %c0_7, %c0_8] : memref<3x32x1xf32, #tpu.memory_space<vmem>>, vector<1x32x1xf32>
    %14 = vector.shape_cast %13 : vector<1x32x1xf32> to vector<32x1xf32>
    %15 = vector.broadcast %14 : vector<32x1xf32> to vector<32x32xf32>
    %16 = arith.mulf %12, %15 : vector<32x32xf32>
    %cst_9 = arith.constant dense<0.000000e+00> : vector<32xf32>
    %17 = vector.multi_reduction <add>, %16, %cst_9 [0] : vector<32x32xf32> to vector<32xf32>
    %18 = vector.shape_cast %17 : vector<32xf32> to vector<1x32xf32>
    %cst_10 = arith.constant 0.0357142873 : f32
    %19 = vector.broadcast %cst_10 : f32 to vector<1x32xf32>
    %20 = arith.mulf %18, %19 : vector<1x32xf32>
    %21 = vector.broadcast %20 : vector<1x32xf32> to vector<32x32xf32>
    %22 = arith.subf %12, %21 : vector<32x32xf32>
    %23 = arith.mulf %22, %22 : vector<32x32xf32>
    %24 = vector.broadcast %14 : vector<32x1xf32> to vector<32x32xf32>
    %25 = arith.mulf %23, %24 : vector<32x32xf32>
    %cst_11 = arith.constant dense<0.000000e+00> : vector<32xf32>
    %26 = vector.multi_reduction <add>, %25, %cst_11 [0] : vector<32x32xf32> to vector<32xf32>
    %27 = vector.shape_cast %26 : vector<32xf32> to vector<1x32xf32>
    %cst_12 = arith.constant 0.0357142873 : f32
    %28 = vector.broadcast %cst_12 : f32 to vector<1x32xf32>
    %29 = arith.mulf %27, %28 : vector<1x32xf32>
    %cst_13 = arith.constant 9.99999974E-6 : f32
    %30 = vector.broadcast %cst_13 : f32 to vector<1x32xf32>
    %31 = arith.addf %29, %30 : vector<1x32xf32>
    %32 = math.rsqrt %31 : vector<1x32xf32>
    %33 = vector.broadcast %32 : vector<1x32xf32> to vector<32x32xf32>
    %34 = arith.mulf %22, %33 : vector<32x32xf32>
    %c3 = arith.constant 3 : index
    %c0_14 = arith.constant 0 : index
    %35 = vector.load %arg4[%c3, %c0_14] : memref<9x32xf32, #tpu.memory_space<vmem>>, vector<1x32xf32>
    %36 = vector.shape_cast %35 : vector<1x32xf32> to vector<32xf32>
    %37 = vector.shape_cast %36 : vector<32xf32> to vector<1x32xf32>
    %38 = vector.broadcast %37 : vector<1x32xf32> to vector<32x32xf32>
    %39 = arith.mulf %34, %38 : vector<32x32xf32>
    %c6 = arith.constant 6 : index
    %c0_15 = arith.constant 0 : index
    %40 = vector.load %arg4[%c6, %c0_15] : memref<9x32xf32, #tpu.memory_space<vmem>>, vector<1x32xf32>
    %41 = vector.shape_cast %40 : vector<1x32xf32> to vector<32xf32>
    %42 = vector.shape_cast %41 : vector<32xf32> to vector<1x32xf32>
    %43 = vector.broadcast %42 : vector<1x32xf32> to vector<32x32xf32>
    %44 = arith.addf %39, %43 : vector<32x32xf32>
    %cst_16 = arith.constant 0.000000e+00 : f32
    %45 = vector.broadcast %cst_16 : f32 to vector<32x32xf32>
    %46 = arith.maximumf %44, %45 : vector<32x32xf32>
    %47 = vector.extract_strided_slice %46 {offsets = [1, 0], sizes = [31, 32], strides = [1, 1]} : vector<32x32xf32> to vector<31x32xf32>
    %48 = vector.extract_strided_slice %46 {offsets = [0, 0], sizes = [1, 32], strides = [1, 1]} : vector<32x32xf32> to vector<1x32xf32>
    %49 = tpu.concatenate %47, %48 in 0 : vector<31x32xf32>, vector<1x32xf32> -> vector<32x32xf32>
    %50 = tpu.concatenate %46, %49 in 1 : vector<32x32xf32>, vector<32x32xf32> -> vector<32x64xf32>
    %c1 = arith.constant 1 : index
    %c0_17 = arith.constant 0 : index
    %c0_18 = arith.constant 0 : index
    %51 = vector.load %arg3[%c1, %c0_17, %c0_18] : memref<3x64x32xf32, #tpu.memory_space<vmem>>, vector<1x64x32xf32>
    %52 = vector.shape_cast %51 : vector<1x64x32xf32> to vector<64x32xf32>
    %cst_19 = arith.constant dense<0.000000e+00> : vector<32x32xf32>
    %53 = tpu.matmul %50, %52, %cst_19 {dimension_numbers = #tpu.dot_dimension_numbers<[1], [0], [0], [1], [0, 0, 1, 1], [], []>} : vector<32x64xf32>, vector<64x32xf32>, vector<32x32xf32> -> vector<32x32xf32>
    %c1_20 = arith.constant 1 : index
    %c0_21 = arith.constant 0 : index
    %54 = vector.load %arg4[%c1_20, %c0_21] : memref<9x32xf32, #tpu.memory_space<vmem>>, vector<1x32xf32>
    %55 = vector.shape_cast %54 : vector<1x32xf32> to vector<32xf32>
    %56 = vector.shape_cast %55 : vector<32xf32> to vector<1x32xf32>
    %57 = vector.broadcast %56 : vector<1x32xf32> to vector<32x32xf32>
    %58 = arith.addf %53, %57 : vector<32x32xf32>
    %c1_22 = arith.constant 1 : index
    %c0_23 = arith.constant 0 : index
    %c0_24 = arith.constant 0 : index
    %59 = vector.load %arg5[%c1_22, %c0_23, %c0_24] : memref<3x32x1xf32, #tpu.memory_space<vmem>>, vector<1x32x1xf32>
    %60 = vector.shape_cast %59 : vector<1x32x1xf32> to vector<32x1xf32>
    %61 = vector.broadcast %60 : vector<32x1xf32> to vector<32x32xf32>
    %62 = arith.mulf %58, %61 : vector<32x32xf32>
    %cst_25 = arith.constant dense<0.000000e+00> : vector<32xf32>
    %63 = vector.multi_reduction <add>, %62, %cst_25 [0] : vector<32x32xf32> to vector<32xf32>
    %64 = vector.shape_cast %63 : vector<32xf32> to vector<1x32xf32>
    %cst_26 = arith.constant 0.0416666679 : f32
    %65 = vector.broadcast %cst_26 : f32 to vector<1x32xf32>
    %66 = arith.mulf %64, %65 : vector<1x32xf32>
    %67 = vector.broadcast %66 : vector<1x32xf32> to vector<32x32xf32>
    %68 = arith.subf %58, %67 : vector<32x32xf32>
    %69 = arith.mulf %68, %68 : vector<32x32xf32>
    %70 = vector.broadcast %60 : vector<32x1xf32> to vector<32x32xf32>
    %71 = arith.mulf %69, %70 : vector<32x32xf32>
    %cst_27 = arith.constant dense<0.000000e+00> : vector<32xf32>
    %72 = vector.multi_reduction <add>, %71, %cst_27 [0] : vector<32x32xf32> to vector<32xf32>
    %73 = vector.shape_cast %72 : vector<32xf32> to vector<1x32xf32>
    %cst_28 = arith.constant 0.0416666679 : f32
    %74 = vector.broadcast %cst_28 : f32 to vector<1x32xf32>
    %75 = arith.mulf %73, %74 : vector<1x32xf32>
    %cst_29 = arith.constant 9.99999974E-6 : f32
    %76 = vector.broadcast %cst_29 : f32 to vector<1x32xf32>
    %77 = arith.addf %75, %76 : vector<1x32xf32>
    %78 = math.rsqrt %77 : vector<1x32xf32>
    %79 = vector.broadcast %78 : vector<1x32xf32> to vector<32x32xf32>
    %80 = arith.mulf %68, %79 : vector<32x32xf32>
    %c4 = arith.constant 4 : index
    %c0_30 = arith.constant 0 : index
    %81 = vector.load %arg4[%c4, %c0_30] : memref<9x32xf32, #tpu.memory_space<vmem>>, vector<1x32xf32>
    %82 = vector.shape_cast %81 : vector<1x32xf32> to vector<32xf32>
    %83 = vector.shape_cast %82 : vector<32xf32> to vector<1x32xf32>
    %84 = vector.broadcast %83 : vector<1x32xf32> to vector<32x32xf32>
    %85 = arith.mulf %80, %84 : vector<32x32xf32>
    %c7 = arith.constant 7 : index
    %c0_31 = arith.constant 0 : index
    %86 = vector.load %arg4[%c7, %c0_31] : memref<9x32xf32, #tpu.memory_space<vmem>>, vector<1x32xf32>
    %87 = vector.shape_cast %86 : vector<1x32xf32> to vector<32xf32>
    %88 = vector.shape_cast %87 : vector<32xf32> to vector<1x32xf32>
    %89 = vector.broadcast %88 : vector<1x32xf32> to vector<32x32xf32>
    %90 = arith.addf %85, %89 : vector<32x32xf32>
    %cst_32 = arith.constant 0.000000e+00 : f32
    %91 = vector.broadcast %cst_32 : f32 to vector<32x32xf32>
    %92 = arith.maximumf %90, %91 : vector<32x32xf32>
    %93 = vector.extract_strided_slice %92 {offsets = [1, 0], sizes = [31, 32], strides = [1, 1]} : vector<32x32xf32> to vector<31x32xf32>
    %94 = vector.extract_strided_slice %92 {offsets = [0, 0], sizes = [1, 32], strides = [1, 1]} : vector<32x32xf32> to vector<1x32xf32>
    %95 = tpu.concatenate %93, %94 in 0 : vector<31x32xf32>, vector<1x32xf32> -> vector<32x32xf32>
    %96 = tpu.concatenate %92, %95 in 1 : vector<32x32xf32>, vector<32x32xf32> -> vector<32x64xf32>
    %c2 = arith.constant 2 : index
    %c0_33 = arith.constant 0 : index
    %c0_34 = arith.constant 0 : index
    %97 = vector.load %arg3[%c2, %c0_33, %c0_34] : memref<3x64x32xf32, #tpu.memory_space<vmem>>, vector<1x64x32xf32>
    %98 = vector.shape_cast %97 : vector<1x64x32xf32> to vector<64x32xf32>
    %cst_35 = arith.constant dense<0.000000e+00> : vector<32x32xf32>
    %99 = tpu.matmul %96, %98, %cst_35 {dimension_numbers = #tpu.dot_dimension_numbers<[1], [0], [0], [1], [0, 0, 1, 1], [], []>} : vector<32x64xf32>, vector<64x32xf32>, vector<32x32xf32> -> vector<32x32xf32>
    %c2_36 = arith.constant 2 : index
    %c0_37 = arith.constant 0 : index
    %100 = vector.load %arg4[%c2_36, %c0_37] : memref<9x32xf32, #tpu.memory_space<vmem>>, vector<1x32xf32>
    %101 = vector.shape_cast %100 : vector<1x32xf32> to vector<32xf32>
    %102 = vector.shape_cast %101 : vector<32xf32> to vector<1x32xf32>
    %103 = vector.broadcast %102 : vector<1x32xf32> to vector<32x32xf32>
    %104 = arith.addf %99, %103 : vector<32x32xf32>
    %c2_38 = arith.constant 2 : index
    %c0_39 = arith.constant 0 : index
    %c0_40 = arith.constant 0 : index
    %105 = vector.load %arg5[%c2_38, %c0_39, %c0_40] : memref<3x32x1xf32, #tpu.memory_space<vmem>>, vector<1x32x1xf32>
    %106 = vector.shape_cast %105 : vector<1x32x1xf32> to vector<32x1xf32>
    %107 = vector.broadcast %106 : vector<32x1xf32> to vector<32x32xf32>
    %108 = arith.mulf %104, %107 : vector<32x32xf32>
    %cst_41 = arith.constant dense<0.000000e+00> : vector<32xf32>
    %109 = vector.multi_reduction <add>, %108, %cst_41 [0] : vector<32x32xf32> to vector<32xf32>
    %110 = vector.shape_cast %109 : vector<32xf32> to vector<1x32xf32>
    %cst_42 = arith.constant 5.000000e-02 : f32
    %111 = vector.broadcast %cst_42 : f32 to vector<1x32xf32>
    %112 = arith.mulf %110, %111 : vector<1x32xf32>
    %113 = vector.broadcast %112 : vector<1x32xf32> to vector<32x32xf32>
    %114 = arith.subf %104, %113 : vector<32x32xf32>
    %115 = arith.mulf %114, %114 : vector<32x32xf32>
    %116 = vector.broadcast %106 : vector<32x1xf32> to vector<32x32xf32>
    %117 = arith.mulf %115, %116 : vector<32x32xf32>
    %cst_43 = arith.constant dense<0.000000e+00> : vector<32xf32>
    %118 = vector.multi_reduction <add>, %117, %cst_43 [0] : vector<32x32xf32> to vector<32xf32>
    %119 = vector.shape_cast %118 : vector<32xf32> to vector<1x32xf32>
    %cst_44 = arith.constant 5.000000e-02 : f32
    %120 = vector.broadcast %cst_44 : f32 to vector<1x32xf32>
    %121 = arith.mulf %119, %120 : vector<1x32xf32>
    %cst_45 = arith.constant 9.99999974E-6 : f32
    %122 = vector.broadcast %cst_45 : f32 to vector<1x32xf32>
    %123 = arith.addf %121, %122 : vector<1x32xf32>
    %124 = math.rsqrt %123 : vector<1x32xf32>
    %125 = vector.broadcast %124 : vector<1x32xf32> to vector<32x32xf32>
    %126 = arith.mulf %114, %125 : vector<32x32xf32>
    %c5 = arith.constant 5 : index
    %c0_46 = arith.constant 0 : index
    %127 = vector.load %arg4[%c5, %c0_46] : memref<9x32xf32, #tpu.memory_space<vmem>>, vector<1x32xf32>
    %128 = vector.shape_cast %127 : vector<1x32xf32> to vector<32xf32>
    %129 = vector.shape_cast %128 : vector<32xf32> to vector<1x32xf32>
    %130 = vector.broadcast %129 : vector<1x32xf32> to vector<32x32xf32>
    %131 = arith.mulf %126, %130 : vector<32x32xf32>
    %c8 = arith.constant 8 : index
    %c0_47 = arith.constant 0 : index
    %132 = vector.load %arg4[%c8, %c0_47] : memref<9x32xf32, #tpu.memory_space<vmem>>, vector<1x32xf32>
    %133 = vector.shape_cast %132 : vector<1x32xf32> to vector<32xf32>
    %134 = vector.shape_cast %133 : vector<32xf32> to vector<1x32xf32>
    %135 = vector.broadcast %134 : vector<1x32xf32> to vector<32x32xf32>
    %136 = arith.addf %131, %135 : vector<32x32xf32>
    %cst_48 = arith.constant 0.000000e+00 : f32
    %137 = vector.broadcast %cst_48 : f32 to vector<32x32xf32>
    %138 = arith.maximumf %136, %137 : vector<32x32xf32>
    %c0_49 = arith.constant 0 : index
    %c0_50 = arith.constant 0 : index
    %139 = vector.load %arg6[%c0_49, %c0_50] : memref<4x32xf32, #tpu.memory_space<vmem>>, vector<4x32xf32>
    %cst_51 = arith.constant dense<0.000000e+00> : vector<4x32xf32>
    %140 = tpu.matmul %139, %138, %cst_51 {dimension_numbers = #tpu.dot_dimension_numbers<[1], [0], [0], [1], [0, 0, 1, 1], [], []>} : vector<4x32xf32>, vector<32x32xf32>, vector<4x32xf32> -> vector<4x32xf32>
    %c0_52 = arith.constant 0 : index
    %c0_53 = arith.constant 0 : index
    %141 = vector.load %arg1[%c0_52, %c0_53] : memref<48x32xf32, #tpu.memory_space<vmem>>, vector<48x32xf32>
    %142 = vector.extract_strided_slice %141 {offsets = [1, 0], sizes = [47, 32], strides = [1, 1]} : vector<48x32xf32> to vector<47x32xf32>
    %143 = vector.extract_strided_slice %141 {offsets = [0, 0], sizes = [1, 32], strides = [1, 1]} : vector<48x32xf32> to vector<1x32xf32>
    %144 = tpu.concatenate %142, %143 in 0 : vector<47x32xf32>, vector<1x32xf32> -> vector<48x32xf32>
    %145 = tpu.concatenate %141, %144 in 1 : vector<48x32xf32>, vector<48x32xf32> -> vector<48x64xf32>
    %c0_54 = arith.constant 0 : index
    %c0_55 = arith.constant 0 : index
    %c0_56 = arith.constant 0 : index
    %146 = vector.load %arg7[%c0_54, %c0_55, %c0_56] : memref<3x64x32xf32, #tpu.memory_space<vmem>>, vector<1x64x32xf32>
    %147 = vector.shape_cast %146 : vector<1x64x32xf32> to vector<64x32xf32>
    %cst_57 = arith.constant dense<0.000000e+00> : vector<48x32xf32>
    %148 = tpu.matmul %145, %147, %cst_57 {dimension_numbers = #tpu.dot_dimension_numbers<[1], [0], [0], [1], [0, 0, 1, 1], [], []>} : vector<48x64xf32>, vector<64x32xf32>, vector<48x32xf32> -> vector<48x32xf32>
    %c0_58 = arith.constant 0 : index
    %c0_59 = arith.constant 0 : index
    %149 = vector.load %arg8[%c0_58, %c0_59] : memref<9x32xf32, #tpu.memory_space<vmem>>, vector<1x32xf32>
    %150 = vector.shape_cast %149 : vector<1x32xf32> to vector<32xf32>
    %151 = vector.shape_cast %150 : vector<32xf32> to vector<1x32xf32>
    %152 = vector.broadcast %151 : vector<1x32xf32> to vector<48x32xf32>
    %153 = arith.addf %148, %152 : vector<48x32xf32>
    %c0_60 = arith.constant 0 : index
    %c0_61 = arith.constant 0 : index
    %c0_62 = arith.constant 0 : index
    %154 = vector.load %arg9[%c0_60, %c0_61, %c0_62] : memref<3x48x1xf32, #tpu.memory_space<vmem>>, vector<1x48x1xf32>
    %155 = vector.shape_cast %154 : vector<1x48x1xf32> to vector<48x1xf32>
    %156 = vector.broadcast %155 : vector<48x1xf32> to vector<48x32xf32>
    %157 = arith.mulf %153, %156 : vector<48x32xf32>
    %cst_63 = arith.constant dense<0.000000e+00> : vector<32xf32>
    %158 = vector.multi_reduction <add>, %157, %cst_63 [0] : vector<48x32xf32> to vector<32xf32>
    %159 = vector.shape_cast %158 : vector<32xf32> to vector<1x32xf32>
    %cst_64 = arith.constant 0.0227272734 : f32
    %160 = vector.broadcast %cst_64 : f32 to vector<1x32xf32>
    %161 = arith.mulf %159, %160 : vector<1x32xf32>
    %162 = vector.broadcast %161 : vector<1x32xf32> to vector<48x32xf32>
    %163 = arith.subf %153, %162 : vector<48x32xf32>
    %164 = arith.mulf %163, %163 : vector<48x32xf32>
    %165 = vector.broadcast %155 : vector<48x1xf32> to vector<48x32xf32>
    %166 = arith.mulf %164, %165 : vector<48x32xf32>
    %cst_65 = arith.constant dense<0.000000e+00> : vector<32xf32>
    %167 = vector.multi_reduction <add>, %166, %cst_65 [0] : vector<48x32xf32> to vector<32xf32>
    %168 = vector.shape_cast %167 : vector<32xf32> to vector<1x32xf32>
    %cst_66 = arith.constant 0.0227272734 : f32
    %169 = vector.broadcast %cst_66 : f32 to vector<1x32xf32>
    %170 = arith.mulf %168, %169 : vector<1x32xf32>
    %cst_67 = arith.constant 9.99999974E-6 : f32
    %171 = vector.broadcast %cst_67 : f32 to vector<1x32xf32>
    %172 = arith.addf %170, %171 : vector<1x32xf32>
    %173 = math.rsqrt %172 : vector<1x32xf32>
    %174 = vector.broadcast %173 : vector<1x32xf32> to vector<48x32xf32>
    %175 = arith.mulf %163, %174 : vector<48x32xf32>
    %c3_68 = arith.constant 3 : index
    %c0_69 = arith.constant 0 : index
    %176 = vector.load %arg8[%c3_68, %c0_69] : memref<9x32xf32, #tpu.memory_space<vmem>>, vector<1x32xf32>
    %177 = vector.shape_cast %176 : vector<1x32xf32> to vector<32xf32>
    %178 = vector.shape_cast %177 : vector<32xf32> to vector<1x32xf32>
    %179 = vector.broadcast %178 : vector<1x32xf32> to vector<48x32xf32>
    %180 = arith.mulf %175, %179 : vector<48x32xf32>
    %c6_70 = arith.constant 6 : index
    %c0_71 = arith.constant 0 : index
    %181 = vector.load %arg8[%c6_70, %c0_71] : memref<9x32xf32, #tpu.memory_space<vmem>>, vector<1x32xf32>
    %182 = vector.shape_cast %181 : vector<1x32xf32> to vector<32xf32>
    %183 = vector.shape_cast %182 : vector<32xf32> to vector<1x32xf32>
    %184 = vector.broadcast %183 : vector<1x32xf32> to vector<48x32xf32>
    %185 = arith.addf %180, %184 : vector<48x32xf32>
    %cst_72 = arith.constant 0.000000e+00 : f32
    %186 = vector.broadcast %cst_72 : f32 to vector<48x32xf32>
    %187 = arith.maximumf %185, %186 : vector<48x32xf32>
    %188 = vector.extract_strided_slice %187 {offsets = [1, 0], sizes = [47, 32], strides = [1, 1]} : vector<48x32xf32> to vector<47x32xf32>
    %189 = vector.extract_strided_slice %187 {offsets = [0, 0], sizes = [1, 32], strides = [1, 1]} : vector<48x32xf32> to vector<1x32xf32>
    %190 = tpu.concatenate %188, %189 in 0 : vector<47x32xf32>, vector<1x32xf32> -> vector<48x32xf32>
    %191 = tpu.concatenate %187, %190 in 1 : vector<48x32xf32>, vector<48x32xf32> -> vector<48x64xf32>
    %c1_73 = arith.constant 1 : index
    %c0_74 = arith.constant 0 : index
    %c0_75 = arith.constant 0 : index
    %192 = vector.load %arg7[%c1_73, %c0_74, %c0_75] : memref<3x64x32xf32, #tpu.memory_space<vmem>>, vector<1x64x32xf32>
    %193 = vector.shape_cast %192 : vector<1x64x32xf32> to vector<64x32xf32>
    %cst_76 = arith.constant dense<0.000000e+00> : vector<48x32xf32>
    %194 = tpu.matmul %191, %193, %cst_76 {dimension_numbers = #tpu.dot_dimension_numbers<[1], [0], [0], [1], [0, 0, 1, 1], [], []>} : vector<48x64xf32>, vector<64x32xf32>, vector<48x32xf32> -> vector<48x32xf32>
    %c1_77 = arith.constant 1 : index
    %c0_78 = arith.constant 0 : index
    %195 = vector.load %arg8[%c1_77, %c0_78] : memref<9x32xf32, #tpu.memory_space<vmem>>, vector<1x32xf32>
    %196 = vector.shape_cast %195 : vector<1x32xf32> to vector<32xf32>
    %197 = vector.shape_cast %196 : vector<32xf32> to vector<1x32xf32>
    %198 = vector.broadcast %197 : vector<1x32xf32> to vector<48x32xf32>
    %199 = arith.addf %194, %198 : vector<48x32xf32>
    %c1_79 = arith.constant 1 : index
    %c0_80 = arith.constant 0 : index
    %c0_81 = arith.constant 0 : index
    %200 = vector.load %arg9[%c1_79, %c0_80, %c0_81] : memref<3x48x1xf32, #tpu.memory_space<vmem>>, vector<1x48x1xf32>
    %201 = vector.shape_cast %200 : vector<1x48x1xf32> to vector<48x1xf32>
    %202 = vector.broadcast %201 : vector<48x1xf32> to vector<48x32xf32>
    %203 = arith.mulf %199, %202 : vector<48x32xf32>
    %cst_82 = arith.constant dense<0.000000e+00> : vector<32xf32>
    %204 = vector.multi_reduction <add>, %203, %cst_82 [0] : vector<48x32xf32> to vector<32xf32>
    %205 = vector.shape_cast %204 : vector<32xf32> to vector<1x32xf32>
    %cst_83 = arith.constant 2.500000e-02 : f32
    %206 = vector.broadcast %cst_83 : f32 to vector<1x32xf32>
    %207 = arith.mulf %205, %206 : vector<1x32xf32>
    %208 = vector.broadcast %207 : vector<1x32xf32> to vector<48x32xf32>
    %209 = arith.subf %199, %208 : vector<48x32xf32>
    %210 = arith.mulf %209, %209 : vector<48x32xf32>
    %211 = vector.broadcast %201 : vector<48x1xf32> to vector<48x32xf32>
    %212 = arith.mulf %210, %211 : vector<48x32xf32>
    %cst_84 = arith.constant dense<0.000000e+00> : vector<32xf32>
    %213 = vector.multi_reduction <add>, %212, %cst_84 [0] : vector<48x32xf32> to vector<32xf32>
    %214 = vector.shape_cast %213 : vector<32xf32> to vector<1x32xf32>
    %cst_85 = arith.constant 2.500000e-02 : f32
    %215 = vector.broadcast %cst_85 : f32 to vector<1x32xf32>
    %216 = arith.mulf %214, %215 : vector<1x32xf32>
    %cst_86 = arith.constant 9.99999974E-6 : f32
    %217 = vector.broadcast %cst_86 : f32 to vector<1x32xf32>
    %218 = arith.addf %216, %217 : vector<1x32xf32>
    %219 = math.rsqrt %218 : vector<1x32xf32>
    %220 = vector.broadcast %219 : vector<1x32xf32> to vector<48x32xf32>
    %221 = arith.mulf %209, %220 : vector<48x32xf32>
    %c4_87 = arith.constant 4 : index
    %c0_88 = arith.constant 0 : index
    %222 = vector.load %arg8[%c4_87, %c0_88] : memref<9x32xf32, #tpu.memory_space<vmem>>, vector<1x32xf32>
    %223 = vector.shape_cast %222 : vector<1x32xf32> to vector<32xf32>
    %224 = vector.shape_cast %223 : vector<32xf32> to vector<1x32xf32>
    %225 = vector.broadcast %224 : vector<1x32xf32> to vector<48x32xf32>
    %226 = arith.mulf %221, %225 : vector<48x32xf32>
    %c7_89 = arith.constant 7 : index
    %c0_90 = arith.constant 0 : index
    %227 = vector.load %arg8[%c7_89, %c0_90] : memref<9x32xf32, #tpu.memory_space<vmem>>, vector<1x32xf32>
    %228 = vector.shape_cast %227 : vector<1x32xf32> to vector<32xf32>
    %229 = vector.shape_cast %228 : vector<32xf32> to vector<1x32xf32>
    %230 = vector.broadcast %229 : vector<1x32xf32> to vector<48x32xf32>
    %231 = arith.addf %226, %230 : vector<48x32xf32>
    %cst_91 = arith.constant 0.000000e+00 : f32
    %232 = vector.broadcast %cst_91 : f32 to vector<48x32xf32>
    %233 = arith.maximumf %231, %232 : vector<48x32xf32>
    %234 = vector.extract_strided_slice %233 {offsets = [1, 0], sizes = [47, 32], strides = [1, 1]} : vector<48x32xf32> to vector<47x32xf32>
    %235 = vector.extract_strided_slice %233 {offsets = [0, 0], sizes = [1, 32], strides = [1, 1]} : vector<48x32xf32> to vector<1x32xf32>
    %236 = tpu.concatenate %234, %235 in 0 : vector<47x32xf32>, vector<1x32xf32> -> vector<48x32xf32>
    %237 = tpu.concatenate %233, %236 in 1 : vector<48x32xf32>, vector<48x32xf32> -> vector<48x64xf32>
    %c2_92 = arith.constant 2 : index
    %c0_93 = arith.constant 0 : index
    %c0_94 = arith.constant 0 : index
    %238 = vector.load %arg7[%c2_92, %c0_93, %c0_94] : memref<3x64x32xf32, #tpu.memory_space<vmem>>, vector<1x64x32xf32>
    %239 = vector.shape_cast %238 : vector<1x64x32xf32> to vector<64x32xf32>
    %cst_95 = arith.constant dense<0.000000e+00> : vector<48x32xf32>
    %240 = tpu.matmul %237, %239, %cst_95 {dimension_numbers = #tpu.dot_dimension_numbers<[1], [0], [0], [1], [0, 0, 1, 1], [], []>} : vector<48x64xf32>, vector<64x32xf32>, vector<48x32xf32> -> vector<48x32xf32>
    %c2_96 = arith.constant 2 : index
    %c0_97 = arith.constant 0 : index
    %241 = vector.load %arg8[%c2_96, %c0_97] : memref<9x32xf32, #tpu.memory_space<vmem>>, vector<1x32xf32>
    %242 = vector.shape_cast %241 : vector<1x32xf32> to vector<32xf32>
    %243 = vector.shape_cast %242 : vector<32xf32> to vector<1x32xf32>
    %244 = vector.broadcast %243 : vector<1x32xf32> to vector<48x32xf32>
    %245 = arith.addf %240, %244 : vector<48x32xf32>
    %c2_98 = arith.constant 2 : index
    %c0_99 = arith.constant 0 : index
    %c0_100 = arith.constant 0 : index
    %246 = vector.load %arg9[%c2_98, %c0_99, %c0_100] : memref<3x48x1xf32, #tpu.memory_space<vmem>>, vector<1x48x1xf32>
    %247 = vector.shape_cast %246 : vector<1x48x1xf32> to vector<48x1xf32>
    %248 = vector.broadcast %247 : vector<48x1xf32> to vector<48x32xf32>
    %249 = arith.mulf %245, %248 : vector<48x32xf32>
    %cst_101 = arith.constant dense<0.000000e+00> : vector<32xf32>
    %250 = vector.multi_reduction <add>, %249, %cst_101 [0] : vector<48x32xf32> to vector<32xf32>
    %251 = vector.shape_cast %250 : vector<32xf32> to vector<1x32xf32>
    %cst_102 = arith.constant 0.027777778 : f32
    %252 = vector.broadcast %cst_102 : f32 to vector<1x32xf32>
    %253 = arith.mulf %251, %252 : vector<1x32xf32>
    %254 = vector.broadcast %253 : vector<1x32xf32> to vector<48x32xf32>
    %255 = arith.subf %245, %254 : vector<48x32xf32>
    %256 = arith.mulf %255, %255 : vector<48x32xf32>
    %257 = vector.broadcast %247 : vector<48x1xf32> to vector<48x32xf32>
    %258 = arith.mulf %256, %257 : vector<48x32xf32>
    %cst_103 = arith.constant dense<0.000000e+00> : vector<32xf32>
    %259 = vector.multi_reduction <add>, %258, %cst_103 [0] : vector<48x32xf32> to vector<32xf32>
    %260 = vector.shape_cast %259 : vector<32xf32> to vector<1x32xf32>
    %cst_104 = arith.constant 0.027777778 : f32
    %261 = vector.broadcast %cst_104 : f32 to vector<1x32xf32>
    %262 = arith.mulf %260, %261 : vector<1x32xf32>
    %cst_105 = arith.constant 9.99999974E-6 : f32
    %263 = vector.broadcast %cst_105 : f32 to vector<1x32xf32>
    %264 = arith.addf %262, %263 : vector<1x32xf32>
    %265 = math.rsqrt %264 : vector<1x32xf32>
    %266 = vector.broadcast %265 : vector<1x32xf32> to vector<48x32xf32>
    %267 = arith.mulf %255, %266 : vector<48x32xf32>
    %c5_106 = arith.constant 5 : index
    %c0_107 = arith.constant 0 : index
    %268 = vector.load %arg8[%c5_106, %c0_107] : memref<9x32xf32, #tpu.memory_space<vmem>>, vector<1x32xf32>
    %269 = vector.shape_cast %268 : vector<1x32xf32> to vector<32xf32>
    %270 = vector.shape_cast %269 : vector<32xf32> to vector<1x32xf32>
    %271 = vector.broadcast %270 : vector<1x32xf32> to vector<48x32xf32>
    %272 = arith.mulf %267, %271 : vector<48x32xf32>
    %c8_108 = arith.constant 8 : index
    %c0_109 = arith.constant 0 : index
    %273 = vector.load %arg8[%c8_108, %c0_109] : memref<9x32xf32, #tpu.memory_space<vmem>>, vector<1x32xf32>
    %274 = vector.shape_cast %273 : vector<1x32xf32> to vector<32xf32>
    %275 = vector.shape_cast %274 : vector<32xf32> to vector<1x32xf32>
    %276 = vector.broadcast %275 : vector<1x32xf32> to vector<48x32xf32>
    %277 = arith.addf %272, %276 : vector<48x32xf32>
    %cst_110 = arith.constant 0.000000e+00 : f32
    %278 = vector.broadcast %cst_110 : f32 to vector<48x32xf32>
    %279 = arith.maximumf %277, %278 : vector<48x32xf32>
    %c0_111 = arith.constant 0 : index
    %c0_112 = arith.constant 0 : index
    %280 = vector.load %arg10[%c0_111, %c0_112] : memref<4x48xf32, #tpu.memory_space<vmem>>, vector<4x48xf32>
    %cst_113 = arith.constant dense<0.000000e+00> : vector<4x32xf32>
    %281 = tpu.matmul %280, %279, %cst_113 {dimension_numbers = #tpu.dot_dimension_numbers<[1], [0], [0], [1], [0, 0, 1, 1], [], []>} : vector<4x48xf32>, vector<48x32xf32>, vector<4x32xf32> -> vector<4x32xf32>
    %c0_114 = arith.constant 0 : index
    %c0_115 = arith.constant 0 : index
    %282 = vector.load %arg2[%c0_114, %c0_115] : memref<4x16xf32, #tpu.memory_space<vmem>>, vector<4x16xf32>
    %c0_116 = arith.constant 0 : index
    %c0_117 = arith.constant 0 : index
    %283 = vector.load %arg11[%c0_116, %c0_117] : memref<16x32xf32, #tpu.memory_space<vmem>>, vector<16x32xf32>
    %cst_118 = arith.constant dense<0.000000e+00> : vector<4x32xf32>
    %284 = tpu.matmul %282, %283, %cst_118 {dimension_numbers = #tpu.dot_dimension_numbers<[1], [0], [0], [1], [0, 0, 1, 1], [], []>} : vector<4x16xf32>, vector<16x32xf32>, vector<4x32xf32> -> vector<4x32xf32>
    %c0_119 = arith.constant 0 : index
    %c0_120 = arith.constant 0 : index
    %285 = vector.load %arg14[%c0_119, %c0_120] : memref<2x32xf32, #tpu.memory_space<vmem>>, vector<1x32xf32>
    %286 = vector.shape_cast %285 : vector<1x32xf32> to vector<32xf32>
    %287 = vector.shape_cast %286 : vector<32xf32> to vector<1x32xf32>
    %288 = vector.broadcast %287 : vector<1x32xf32> to vector<4x32xf32>
    %289 = arith.addf %284, %288 : vector<4x32xf32>
    %cst_121 = arith.constant 0.000000e+00 : f32
    %290 = vector.broadcast %cst_121 : f32 to vector<4x32xf32>
    %291 = arith.maximumf %289, %290 : vector<4x32xf32>
    %c0_122 = arith.constant 0 : index
    %c0_123 = arith.constant 0 : index
    %292 = vector.load %arg12[%c0_122, %c0_123] : memref<32x320xf32, #tpu.memory_space<vmem>>, vector<32x320xf32>
    %cst_124 = arith.constant dense<0.000000e+00> : vector<4x320xf32>
    %293 = tpu.matmul %291, %292, %cst_124 {dimension_numbers = #tpu.dot_dimension_numbers<[1], [0], [0], [1], [0, 0, 1, 1], [], []>} : vector<4x32xf32>, vector<32x320xf32>, vector<4x320xf32> -> vector<4x320xf32>
    %c0_125 = arith.constant 0 : index
    %c0_126 = arith.constant 0 : index
    %294 = vector.load %arg15[%c0_125, %c0_126] : memref<3x320xf32, #tpu.memory_space<vmem>>, vector<1x320xf32>
    %295 = vector.shape_cast %294 : vector<1x320xf32> to vector<320xf32>
    %296 = vector.shape_cast %295 : vector<320xf32> to vector<1x320xf32>
    %297 = vector.broadcast %296 : vector<1x320xf32> to vector<4x320xf32>
    %298 = arith.addf %293, %297 : vector<4x320xf32>
    %cst_127 = arith.constant dense<0.000000e+00> : vector<320xf32>
    %299 = vector.multi_reduction <add>, %298, %cst_127 [0] : vector<4x320xf32> to vector<320xf32>
    %300 = vector.shape_cast %299 : vector<320xf32> to vector<1x320xf32>
    %cst_128 = arith.constant 4.000000e+00 : f32
    %301 = vector.broadcast %cst_128 : f32 to vector<1x320xf32>
    %302 = arith.divf %300, %301 : vector<1x320xf32>
    %303 = vector.broadcast %302 : vector<1x320xf32> to vector<4x320xf32>
    %304 = arith.subf %298, %303 : vector<4x320xf32>
    %305 = arith.mulf %304, %304 : vector<4x320xf32>
    %cst_129 = arith.constant dense<0.000000e+00> : vector<320xf32>
    %306 = vector.multi_reduction <add>, %305, %cst_129 [0] : vector<4x320xf32> to vector<320xf32>
    %307 = vector.shape_cast %306 : vector<320xf32> to vector<1x320xf32>
    %cst_130 = arith.constant 4.000000e+00 : f32
    %308 = vector.broadcast %cst_130 : f32 to vector<1x320xf32>
    %309 = arith.divf %307, %308 : vector<1x320xf32>
    %cst_131 = arith.constant 9.99999974E-6 : f32
    %310 = vector.broadcast %cst_131 : f32 to vector<1x320xf32>
    %311 = arith.addf %309, %310 : vector<1x320xf32>
    %312 = math.rsqrt %311 : vector<1x320xf32>
    %313 = vector.broadcast %312 : vector<1x320xf32> to vector<4x320xf32>
    %314 = arith.mulf %304, %313 : vector<4x320xf32>
    %c1_132 = arith.constant 1 : index
    %c0_133 = arith.constant 0 : index
    %315 = vector.load %arg15[%c1_132, %c0_133] : memref<3x320xf32, #tpu.memory_space<vmem>>, vector<1x320xf32>
    %316 = vector.shape_cast %315 : vector<1x320xf32> to vector<320xf32>
    %317 = vector.shape_cast %316 : vector<320xf32> to vector<1x320xf32>
    %318 = vector.broadcast %317 : vector<1x320xf32> to vector<4x320xf32>
    %319 = arith.mulf %314, %318 : vector<4x320xf32>
    %c2_134 = arith.constant 2 : index
    %c0_135 = arith.constant 0 : index
    %320 = vector.load %arg15[%c2_134, %c0_135] : memref<3x320xf32, #tpu.memory_space<vmem>>, vector<1x320xf32>
    %321 = vector.shape_cast %320 : vector<1x320xf32> to vector<320xf32>
    %322 = vector.shape_cast %321 : vector<320xf32> to vector<1x320xf32>
    %323 = vector.broadcast %322 : vector<1x320xf32> to vector<4x320xf32>
    %324 = arith.addf %319, %323 : vector<4x320xf32>
    %cst_136 = arith.constant 0.000000e+00 : f32
    %325 = vector.broadcast %cst_136 : f32 to vector<4x320xf32>
    %326 = arith.maximumf %324, %325 : vector<4x320xf32>
    %c0_137 = arith.constant 0 : index
    %c0_138 = arith.constant 0 : index
    %327 = vector.load %arg13[%c0_137, %c0_138] : memref<320x32xf32, #tpu.memory_space<vmem>>, vector<320x32xf32>
    %cst_139 = arith.constant dense<0.000000e+00> : vector<4x32xf32>
    %328 = tpu.matmul %326, %327, %cst_139 {dimension_numbers = #tpu.dot_dimension_numbers<[1], [0], [0], [1], [0, 0, 1, 1], [], []>} : vector<4x320xf32>, vector<320x32xf32>, vector<4x32xf32> -> vector<4x32xf32>
    %c1_140 = arith.constant 1 : index
    %c0_141 = arith.constant 0 : index
    %329 = vector.load %arg14[%c1_140, %c0_141] : memref<2x32xf32, #tpu.memory_space<vmem>>, vector<1x32xf32>
    %330 = vector.shape_cast %329 : vector<1x32xf32> to vector<32xf32>
    %331 = vector.shape_cast %330 : vector<32xf32> to vector<1x32xf32>
    %332 = vector.broadcast %331 : vector<1x32xf32> to vector<4x32xf32>
    %333 = arith.addf %328, %332 : vector<4x32xf32>
    %334 = tpu.concatenate %140, %281, %333 in 1 : vector<4x32xf32>, vector<4x32xf32>, vector<4x32xf32> -> vector<4x96xf32>
    %c0_142 = arith.constant 0 : index
    %c0_143 = arith.constant 0 : index
    %335 = vector.load %arg16[%c0_142, %c0_143] : memref<96x64xf32, #tpu.memory_space<vmem>>, vector<96x64xf32>
    %cst_144 = arith.constant dense<0.000000e+00> : vector<4x64xf32>
    %336 = tpu.matmul %334, %335, %cst_144 {dimension_numbers = #tpu.dot_dimension_numbers<[1], [0], [0], [1], [0, 0, 1, 1], [], []>} : vector<4x96xf32>, vector<96x64xf32>, vector<4x64xf32> -> vector<4x64xf32>
    %c0_145 = arith.constant 0 : index
    %c0_146 = arith.constant 0 : index
    %337 = vector.load %arg17[%c0_145, %c0_146] : memref<1x64xf32, #tpu.memory_space<vmem>>, vector<1x64xf32>
    %338 = vector.broadcast %337 : vector<1x64xf32> to vector<4x64xf32>
    %339 = arith.addf %336, %338 : vector<4x64xf32>
    %c0_147 = arith.constant 0 : index
    %c0_148 = arith.constant 0 : index
    %340 = vector.load %arg18[%c0_147, %c0_148] : memref<64x1xf32, #tpu.memory_space<vmem>>, vector<64x1xf32>
    %cst_149 = arith.constant dense<0.000000e+00> : vector<4x1xf32>
    %341 = tpu.matmul %339, %340, %cst_149 {dimension_numbers = #tpu.dot_dimension_numbers<[1], [0], [0], [1], [0, 0, 1, 1], [], []>} : vector<4x64xf32>, vector<64x1xf32>, vector<4x1xf32> -> vector<4x1xf32>
    %c0_150 = arith.constant 0 : index
    %c0_151 = arith.constant 0 : index
    %342 = vector.load %arg19[%c0_150, %c0_151] : memref<1x1xf32, #tpu.memory_space<vmem>>, vector<1x1xf32>
    %343 = vector.broadcast %342 : vector<1x1xf32> to vector<4x1xf32>
    %344 = arith.addf %341, %343 : vector<4x1xf32>
    %cst_152 = arith.constant 0.000000e+00 : f32
    %345 = vector.broadcast %cst_152 : f32 to vector<4x1xf32>
    %346 = arith.maximumf %344, %345 : vector<4x1xf32>
    %c0_153 = arith.constant 0 : index
    %c0_154 = arith.constant 0 : index
    %347 = vector.load %arg20[%c0_153, %c0_154] : memref<4x1xf32, #tpu.memory_space<vmem>>, vector<4x1xf32>
    tpu.vector_store %arg20[%c0_153, %c0_154], %346 {strides = array<i32>} : memref<4x1xf32, #tpu.memory_space<vmem>>, vector<4x1xf32>,
    return
  }
}

</mosaic_0001>

<llo_original>
// kernel: tpu_custom_call.1
$region0: #{tpu_custom_call.1}
  #allocation0 [shape = 'u32[]', space=smem, size = 0x4, offset = 0x4, fixed_abs, tag = 'smem constant byte address 0x4 - core index']
  #allocation1 [shape = 'u32[72,128]{1,0:T(1,128)}', space=vmem, size = 0x9000, scoped, tag = 'internal scratch']
  #allocation2 [shape = 'f32[1,1]{1,0:T(1,128)S(1)}', space=vmem, size = 0x200, scoped, tag = 'scoped memory for tpu_custom_call.1']
  %s0 = inlined_call_operand.vmem [shape: f32[32,32], index: 0, kind: input, shape index: {}]
  %s1 = inlined_call_operand.vmem [shape: f32[48,32], index: 1, kind: input, shape index: {}]
  %s2 = inlined_call_operand.vmem [shape: f32[4,16], index: 2, kind: input, shape index: {}]
  %s3 = inlined_call_operand.vmem [shape: f32[3,64,32], index: 3, kind: input, shape index: {}]
  %s4 = inlined_call_operand.vmem [shape: f32[9,32], index: 4, kind: input, shape index: {}]
  %s5 = inlined_call_operand.vmem [shape: f32[3,32,1], index: 5, kind: input, shape index: {}]
  %s6 = inlined_call_operand.vmem [shape: f32[4,32], index: 6, kind: input, shape index: {}]
  %s7 = inlined_call_operand.vmem [shape: f32[3,64,32], index: 7, kind: input, shape index: {}]
  %s8 = inlined_call_operand.vmem [shape: f32[9,32], index: 8, kind: input, shape index: {}]
  %s9 = inlined_call_operand.vmem [shape: f32[3,48,1], index: 9, kind: input, shape index: {}]
  %s10 = inlined_call_operand.vmem [shape: f32[4,48], index: 10, kind: input, shape index: {}]
  %s11 = inlined_call_operand.vmem [shape: f32[16,32], index: 11, kind: input, shape index: {}]
  %s12 = inlined_call_operand.vmem [shape: f32[32,320], index: 12, kind: input, shape index: {}]
  %s13 = inlined_call_operand.vmem [shape: f32[320,32], index: 13, kind: input, shape index: {}]
  %s14 = inlined_call_operand.vmem [shape: f32[2,32], index: 14, kind: input, shape index: {}]
  %s15 = inlined_call_operand.vmem [shape: f32[3,320], index: 15, kind: input, shape index: {}]
  %s16 = inlined_call_operand.vmem [shape: f32[96,64], index: 16, kind: input, shape index: {}]
  %s17 = inlined_call_operand.vmem [shape: f32[1,64], index: 17, kind: input, shape index: {}]
  %s18 = inlined_call_operand.vmem [shape: f32[64,1], index: 18, kind: input, shape index: {}]
  %s19 = inlined_call_operand.<no memory space> [shape: f32[1,1], index: 19, kind: input, shape index: {}]
  %s20 = inlined_call_operand.vmem [shape: f32[4,1], index: 20, kind: output, shape index: {}]
  %s21 = sld [smem:[#allocation0]]
  $region90: #{tpu_custom_call.1} parent=0
    _
  %s23 = ssub.s32 1, %s21
  %s24 = scalar_select 0, %s23, %s21
  %v25 = vstv %s19
  %26 = vst [vmem:[#allocation2] sm:$0x1] %v25
  // Predicated region
  $region2: #{tpu_custom_call.1} parent=0 // pred_check
    _
  $region3: #{tpu_custom_call.1} parent=0 // pred_check_branch
    %28 = sbr.rel (0) target = $region5
  $region4: #{tpu_custom_call.1} parent=0 // pred_region
    _
  $region5: #{tpu_custom_call.1} parent=0 // pred_fallthru
    _
  // Predicated region
  $region6: #{tpu_custom_call.1} parent=0 // pred_check
    _
  $region7: #{tpu_custom_call.1} parent=0 // pred_check_branch
    %30 = sbr.rel (0) target = $region9
  $region8: #{tpu_custom_call.1} parent=0 // pred_region
    _
  $region9: #{tpu_custom_call.1} parent=0 // pred_fallthru
    _
  // Predicated region
  $region10: #{tpu_custom_call.1} parent=0 // pred_check
    _
  $region11: #{tpu_custom_call.1} parent=0 // pred_check_branch
    %32 = sbr.rel (0) target = $region13
  $region12: #{tpu_custom_call.1} parent=0 // pred_region
    _
  $region13: #{tpu_custom_call.1} parent=0 // pred_fallthru
    _
  // Predicated region
  $region14: #{tpu_custom_call.1} parent=0 // pred_check
    _
  $region15: #{tpu_custom_call.1} parent=0 // pred_check_branch
    %34 = sbr.rel (0) target = $region17
  $region16: #{tpu_custom_call.1} parent=0 // pred_region
    _
  $region17: #{tpu_custom_call.1} parent=0 // pred_fallthru
    _
  // Predicated region
  $region18: #{tpu_custom_call.1} parent=0 // pred_check
    _
  $region19: #{tpu_custom_call.1} parent=0 // pred_check_branch
    %36 = sbr.rel (0) target = $region21
  $region20: #{tpu_custom_call.1} parent=0 // pred_region
    _
  $region21: #{tpu_custom_call.1} parent=0 // pred_fallthru
    _
  // Predicated region
  $region22: #{tpu_custom_call.1} parent=0 // pred_check
    _
  $region23: #{tpu_custom_call.1} parent=0 // pred_check_branch
    %38 = sbr.rel (0) target = $region25
  $region24: #{tpu_custom_call.1} parent=0 // pred_region
    _
  $region25: #{tpu_custom_call.1} parent=0 // pred_fallthru
    _
  // Predicated region
  $region26: #{tpu_custom_call.1} parent=0 // pred_check
    _
  $region27: #{tpu_custom_call.1} parent=0 // pred_check_branch
    %40 = sbr.rel (0) target = $region29
  $region28: #{tpu_custom_call.1} parent=0 // pred_region
    _
  $region29: #{tpu_custom_call.1} parent=0 // pred_fallthru
    _
  // Predicated region
  $region30: #{tpu_custom_call.1} parent=0 // pred_check
    _
  $region31: #{tpu_custom_call.1} parent=0 // pred_check_branch
    %42 = sbr.rel (0) target = $region33
  $region32: #{tpu_custom_call.1} parent=0 // pred_region
    _
  $region33: #{tpu_custom_call.1} parent=0 // pred_fallthru
    _
  // Predicated region
  $region34: #{tpu_custom_call.1} parent=0 // pred_check
    _
  $region35: #{tpu_custom_call.1} parent=0 // pred_check_branch
    %44 = sbr.rel (0) target = $region37
  $region36: #{tpu_custom_call.1} parent=0 // pred_region
    _
  $region37: #{tpu_custom_call.1} parent=0 // pred_fallthru
    _
  // Predicated region
  $region38: #{tpu_custom_call.1} parent=0 // pred_check
    _
  $region39: #{tpu_custom_call.1} parent=0 // pred_check_branch
    %46 = sbr.rel (0) target = $region41
  $region40: #{tpu_custom_call.1} parent=0 // pred_region
    _
  $region41: #{tpu_custom_call.1} parent=0 // pred_fallthru
    _
  // Predicated region
  $region42: #{tpu_custom_call.1} parent=0 // pred_check
    _
  $region43: #{tpu_custom_call.1} parent=0 // pred_check_branch
    %48 = sbr.rel (0) target = $region45
  $region44: #{tpu_custom_call.1} parent=0 // pred_region
    _
  $region45: #{tpu_custom_call.1} parent=0 // pred_fallthru
    _
  // Predicated region
  $region46: #{tpu_custom_call.1} parent=0 // pred_check
    _
  $region47: #{tpu_custom_call.1} parent=0 // pred_check_branch
    %50 = sbr.rel (0) target = $region49
  $region48: #{tpu_custom_call.1} parent=0 // pred_region
    _
  $region49: #{tpu_custom_call.1} parent=0 // pred_fallthru
    _
  // Predicated region
  $region50: #{tpu_custom_call.1} parent=0 // pred_check
    _
  $region51: #{tpu_custom_call.1} parent=0 // pred_check_branch
    %52 = sbr.rel (0) target = $region53
  $region52: #{tpu_custom_call.1} parent=0 // pred_region
    _
  $region53: #{tpu_custom_call.1} parent=0 // pred_fallthru
    _
  // Predicated region
  $region54: #{tpu_custom_call.1} parent=0 // pred_check
    _
  $region55: #{tpu_custom_call.1} parent=0 // pred_check_branch
    %54 = sbr.rel (0) target = $region57
  $region56: #{tpu_custom_call.1} parent=0 // pred_region
    _
  $region57: #{tpu_custom_call.1} parent=0 // pred_fallthru
    _
  // Predicated region
  $region58: #{tpu_custom_call.1} parent=0 // pred_check
    _
  $region59: #{tpu_custom_call.1} parent=0 // pred_check_branch
    %56 = sbr.rel (0) target = $region61
  $region60: #{tpu_custom_call.1} parent=0 // pred_region
    _
  $region61: #{tpu_custom_call.1} parent=0 // pred_fallthru
    _
  // Predicated region
  $region62: #{tpu_custom_call.1} parent=0 // pred_check
    _
  $region63: #{tpu_custom_call.1} parent=0 // pred_check_branch
    %58 = sbr.rel (0) target = $region65
  $region64: #{tpu_custom_call.1} parent=0 // pred_region
    _
  $region65: #{tpu_custom_call.1} parent=0 // pred_fallthru
    _
  // Predicated region
  $region66: #{tpu_custom_call.1} parent=0 // pred_check
    _
  $region67: #{tpu_custom_call.1} parent=0 // pred_check_branch
    %60 = sbr.rel (0) target = $region69
  $region68: #{tpu_custom_call.1} parent=0 // pred_region
    _
  $region69: #{tpu_custom_call.1} parent=0 // pred_fallthru
    _
  // Predicated region
  $region70: #{tpu_custom_call.1} parent=0 // pred_check
    _
  $region71: #{tpu_custom_call.1} parent=0 // pred_check_branch
    %62 = sbr.rel (0) target = $region73
  $region72: #{tpu_custom_call.1} parent=0 // pred_region
    _
  $region73: #{tpu_custom_call.1} parent=0 // pred_fallthru
    _
  // Predicated region
  $region74: #{tpu_custom_call.1} parent=0 // pred_check
    _
  $region75: #{tpu_custom_call.1} parent=0 // pred_check_branch
    %64 = sbr.rel (0) target = $region77
  $region76: #{tpu_custom_call.1} parent=0 // pred_region
    _
  $region77: #{tpu_custom_call.1} parent=0 // pred_fallthru
    _
  // Predicated region
  $region78: #{tpu_custom_call.1} parent=0 // pred_check
    _
  $region79: #{tpu_custom_call.1} parent=0 // pred_check_branch
    %66 = sbr.rel (0) target = $region81
  $region80: #{tpu_custom_call.1} parent=0 // pred_region
    _
  $region81: #{tpu_custom_call.1} parent=0 // pred_fallthru
    _
  %v67 = vld [vmem:[%s0] sm:$0xff]
  %v68 = vld [vmem:[%s0 + $0x8] sm:$0xff]
  %v69 = vld [vmem:[%s0 + $0x10] sm:$0xff]
  %v70 = vld [vmem:[%s0 + $0x18] sm:$0xff]
  %vm75 = vcmask 1046528
  %v76 = vrot.slane %v67, 1
  %v77 = vrot.slane %v68, 1
  %v78 = vsel %vm75, %v76, %v77
  %v79 = vrot.slane %v69, 1
  %v80 = vsel %vm75, %v77, %v79
  %v81 = vrot.slane %v70, 1
  %v82 = vsel %vm75, %v79, %v81
  %v85 = vsel %vm75, %v81, %v76
  %87 = vrot.lane.b32.xlu0 %v78, 32
  %v88 = vpop.permute.xlu0 %87
  %89 = vrot.lane.b32.xlu0 %v80, 32
  %v90 = vpop.permute.xlu0 %89
  %91 = vrot.lane.b32.xlu0 %v82, 32
  %v92 = vpop.permute.xlu0 %91
  %93 = vrot.lane.b32.xlu0 %v85, 32
  %v94 = vpop.permute.xlu0 %93
  %vm99 = vcmask 261120
  %v100 = vsel %vm99, %v67, %v88
  %v101 = vsel %vm99, %v68, %v90
  %v102 = vsel %vm99, %v69, %v92
  %v103 = vsel %vm99, %v70, %v94
  %v104 = vld [vmem:[%s3] sm:$0xff]
  %v105 = vld [vmem:[%s3 + $0x8] sm:$0xff]
  %v106 = vld [vmem:[%s3 + $0x10] sm:$0xff]
  %v107 = vld [vmem:[%s3 + $0x18] sm:$0xff]
  %v108 = vld [vmem:[%s3 + $0x20] sm:$0xff]
  %v109 = vld [vmem:[%s3 + $0x28] sm:$0xff]
  %v110 = vld [vmem:[%s3 + $0x30] sm:$0xff]
  %v111 = vld [vmem:[%s3 + $0x38] sm:$0xff]
  %v112 = vld [vmem:[%s4] sm:$0x1]
  %v113 = vperm.slane %v112, 0
  %vm114 = vcmask 523264
  %v116 = vsel %vm114, %v100, 0
  %v119 = vsel %vm114, %v101, 0
  %v122 = vsel %vm114, %v102, 0
  %v125 = vsel %vm114, %v103, 0
  %127 = vmatpush.msra.mxu0 0.0
  %128 = vmatpush.msra.mxu0 0.0
  %129 = vmatpush.msra.mxu0 0.0
  %130 = vmatpush.msra.mxu0 0.0
  %131 = vmatpush.msra.mxu0 0.0
  %132 = vmatpush.msra.mxu0 0.0
  %133 = vmatpush.msra.mxu0 0.0
  %134 = vmatpush.msra.mxu0 0.0
  %135 = vmatpush.msra.mxu0 %v111
  %136 = vmatpush.msra.mxu0 %v110
  %137 = vmatpush.msra.mxu0 %v109
  %138 = vmatpush.msra.mxu0 %v108
  %139 = vmatpush.msra.mxu0 %v107
  %140 = vmatpush.msra.mxu0 %v106
  %141 = vmatpush.msra.mxu0 %v105
  %142 = vmatpush.msra.mxu0 %v104
  %143 = vmatmul.f32.gmra.mxu0 %v116
  %v144 = vpop.f32.mrf.mxu0
  %v145 = vadd.f32 %v113, %v144
  %146 = vmatmul.f32.gmra.mxu0 %v119
  %v147 = vpop.f32.mrf.mxu0
  %v148 = vadd.f32 %v113, %v147
  %149 = vmatmul.f32.gmra.mxu0 %v122
  %v150 = vpop.f32.mrf.mxu0
  %v151 = vadd.f32 %v113, %v150
  %152 = vmatmul.f32.gmra.mxu0 %v125
  %v153 = vpop.f32.mrf.mxu0
  %v154 = vadd.f32 %v113, %v153
  %155 = vdwg.mxu0
  %v156 = vld [vmem:[%s5] sm:$0xff]
  %v157 = vld [vmem:[%s5 + $0x8] sm:$0xff]
  %v158 = vld [vmem:[%s5 + $0x10] sm:$0xff]
  %v159 = vld [vmem:[%s5 + $0x18] sm:$0xff]
  %161 = vset.pattern.permute.xlu0 0
  %162 = vperm.xlu0 %161, %v156
  %v163 = vpop.permute.xlu0 %162
  %166 = vset.pattern.permute.xlu0 0
  %167 = vperm.xlu0 %166, %v157
  %v168 = vpop.permute.xlu0 %167
  %171 = vset.pattern.permute.xlu0 0
  %172 = vperm.xlu0 %171, %v158
  %v173 = vpop.permute.xlu0 %172
  %176 = vset.pattern.permute.xlu0 0
  %177 = vperm.xlu0 %176, %v159
  %v178 = vpop.permute.xlu0 %177
  %v180 = vmul.f32 %v145, %v163
  %v181 = vmul.f32 %v148, %v168
  %v182 = vmul.f32 %v151, %v173
  %v183 = vmul.f32 %v154, %v178
  %v184 = vsel %vm99, %v180, 0.0
  %v185 = vsel %vm99, %v181, 0.0
  %v186 = vadd.f32 %v184, %v185
  %v187 = vsel %vm99, %v182, 0.0
  %v188 = vadd.f32 %v186, %v187
  %v189 = vsel %vm99, %v183, 0.0
  %v190 = vadd.f32 %v188, %v189
  %v191 = vrot.slane %v190, 4
  %v192 = vadd.f32 %v190, %v191
  %v193 = vrot.slane %v192, 2
  %v194 = vadd.f32 %v192, %v193
  %v195 = vrot.slane %v194, 1
  %v196 = vadd.f32 %v194, %v195
  %v197 = vmul.f32 %v196, 0.035714287
  %v198 = vsub.f32 %v145, %v197
  %v199 = vsub.f32 %v148, %v197
  %v200 = vsub.f32 %v151, %v197
  %v201 = vsub.f32 %v154, %v197
  %v202 = vmul.f32 %v198, %v198
  %v203 = vmul.f32 %v199, %v199
  %v204 = vmul.f32 %v200, %v200
  %v205 = vmul.f32 %v201, %v201
  %v206 = vmul.f32 %v202, %v163
  %v207 = vmul.f32 %v203, %v168
  %v208 = vmul.f32 %v204, %v173
  %v209 = vmul.f32 %v205, %v178
  %v210 = vsel %vm99, %v206, 0.0
  %v211 = vsel %vm99, %v207, 0.0
  %v212 = vadd.f32 %v210, %v211
  %v213 = vsel %vm99, %v208, 0.0
  %v214 = vadd.f32 %v212, %v213
  %v215 = vsel %vm99, %v209, 0.0
  %v216 = vadd.f32 %v214, %v215
  %v217 = vrot.slane %v216, 4
  %v218 = vadd.f32 %v216, %v217
  %v219 = vrot.slane %v218, 2
  %v220 = vadd.f32 %v218, %v219
  %v221 = vrot.slane %v220, 1
  %v222 = vadd.f32 %v220, %v221
  %v223 = vmul.f32 %v222, 0.035714287
  %v224 = vadd.f32 %v223, 1e-05
  %v225 = vrsqrt.pop %v224
  %v226 = vmul.f32 %v225, %v224
  %v227 = vmul.f32 %v226, %v225
  %v228 = vmul.f32 0.5, %v227
  %v229 = vsub.f32 1.5, %v228
  %v230 = vmul.f32 %v225, %v229
  %vm231 = vweird.f32 %v224
  %vm232 = vweird.f32 %v225
  %vm233 = vmor %vm231, %vm232
  %v234 = vsel %vm233, %v225, %v230
  %v235 = vmul.f32 %v198, %v234
  %v236 = vmul.f32 %v199, %v234
  %v237 = vmul.f32 %v200, %v234
  %v238 = vmul.f32 %v201, %v234
  %v239 = vld [vmem:[%s4 + $0x3] sm:$0x1]
  %v240 = vperm.slane %v239, 0
  %v241 = vmul.f32 %v235, %v240
  %v242 = vmul.f32 %v236, %v240
  %v243 = vmul.f32 %v237, %v240
  %v244 = vmul.f32 %v238, %v240
  %v245 = vld [vmem:[%s4 + $0x6] sm:$0x1]
  %v246 = vperm.slane %v245, 0
  %v247 = vadd.f32 %v241, %v246
  %v248 = vadd.f32 %v242, %v246
  %v249 = vadd.f32 %v243, %v246
  %v250 = vadd.f32 %v244, %v246
  %v251 = vmax.f32 %v247, 0.0
  %v252 = vmax.f32 %v248, 0.0
  %v253 = vmax.f32 %v249, 0.0
  %v254 = vmax.f32 %v250, 0.0
  %v259 = vrot.slane %v251, 1
  %v260 = vrot.slane %v252, 1
  %v261 = vsel %vm75, %v259, %v260
  %v262 = vrot.slane %v253, 1
  %v263 = vsel %vm75, %v260, %v262
  %v264 = vrot.slane %v254, 1
  %v265 = vsel %vm75, %v262, %v264
  %v268 = vsel %vm75, %v264, %v259
  %270 = vrot.lane.b32.xlu0 %v261, 32
  %v271 = vpop.permute.xlu0 %270
  %272 = vrot.lane.b32.xlu0 %v263, 32
  %v273 = vpop.permute.xlu0 %272
  %274 = vrot.lane.b32.xlu0 %v265, 32
  %v275 = vpop.permute.xlu0 %274
  %276 = vrot.lane.b32.xlu0 %v268, 32
  %v277 = vpop.permute.xlu0 %276
  %v282 = vsel %vm99, %v251, %v271
  %v283 = vsel %vm99, %v252, %v273
  %v284 = vsel %vm99, %v253, %v275
  %v285 = vsel %vm99, %v254, %v277
  %s286 = scalar_lea.vmem %s3, 64
  %v287 = vld [vmem:[%s286] sm:$0xff]
  %v288 = vld [vmem:[%s286 + $0x8] sm:$0xff]
  %v289 = vld [vmem:[%s286 + $0x10] sm:$0xff]
  %v290 = vld [vmem:[%s286 + $0x18] sm:$0xff]
  %v291 = vld [vmem:[%s286 + $0x20] sm:$0xff]
  %v292 = vld [vmem:[%s286 + $0x28] sm:$0xff]
  %v293 = vld [vmem:[%s286 + $0x30] sm:$0xff]
  %v294 = vld [vmem:[%s286 + $0x38] sm:$0xff]
  %v295 = vld [vmem:[%s4 + $0x1] sm:$0x1]
  %v296 = vperm.slane %v295, 0
  %v298 = vsel %vm114, %v282, 0
  %v301 = vsel %vm114, %v283, 0
  %v304 = vsel %vm114, %v284, 0
  %v307 = vsel %vm114, %v285, 0
  %309 = vmatpush.msra.mxu0 0.0
  %310 = vmatpush.msra.mxu0 0.0
  %311 = vmatpush.msra.mxu0 0.0
  %312 = vmatpush.msra.mxu0 0.0
  %313 = vmatpush.msra.mxu0 0.0
  %314 = vmatpush.msra.mxu0 0.0
  %315 = vmatpush.msra.mxu0 0.0
  %316 = vmatpush.msra.mxu0 0.0
  %317 = vmatpush.msra.mxu0 %v294
  %318 = vmatpush.msra.mxu0 %v293
  %319 = vmatpush.msra.mxu0 %v292
  %320 = vmatpush.msra.mxu0 %v291
  %321 = vmatpush.msra.mxu0 %v290
  %322 = vmatpush.msra.mxu0 %v289
  %323 = vmatpush.msra.mxu0 %v288
  %324 = vmatpush.msra.mxu0 %v287
  %325 = vmatmul.f32.gmra.mxu0 %v298
  %v326 = vpop.f32.mrf.mxu0
  %v327 = vadd.f32 %v296, %v326
  %328 = vmatmul.f32.gmra.mxu0 %v301
  %v329 = vpop.f32.mrf.mxu0
  %v330 = vadd.f32 %v296, %v329
  %331 = vmatmul.f32.gmra.mxu0 %v304
  %v332 = vpop.f32.mrf.mxu0
  %v333 = vadd.f32 %v296, %v332
  %334 = vmatmul.f32.gmra.mxu0 %v307
  %v335 = vpop.f32.mrf.mxu0
  %v336 = vadd.f32 %v296, %v335
  %337 = vdwg.mxu0
  %s338 = scalar_lea.vmem %s5, 32
  %v339 = vld [vmem:[%s338] sm:$0xff]
  %v340 = vld [vmem:[%s338 + $0x8] sm:$0xff]
  %v341 = vld [vmem:[%s338 + $0x10] sm:$0xff]
  %v342 = vld [vmem:[%s338 + $0x18] sm:$0xff]
  %344 = vset.pattern.permute.xlu0 0
  %345 = vperm.xlu0 %344, %v339
  %v346 = vpop.permute.xlu0 %345
  %349 = vset.pattern.permute.xlu0 0
  %350 = vperm.xlu0 %349, %v340
  %v351 = vpop.permute.xlu0 %350
  %354 = vset.pattern.permute.xlu0 0
  %355 = vperm.xlu0 %354, %v341
  %v356 = vpop.permute.xlu0 %355
  %359 = vset.pattern.permute.xlu0 0
  %360 = vperm.xlu0 %359, %v342
  %v361 = vpop.permute.xlu0 %360
  %v363 = vmul.f32 %v327, %v346
  %v364 = vmul.f32 %v330, %v351
  %v365 = vmul.f32 %v333, %v356
  %v366 = vmul.f32 %v336, %v361
  %v367 = vsel %vm99, %v363, 0.0
  %v368 = vsel %vm99, %v364, 0.0
  %v369 = vadd.f32 %v367, %v368
  %v370 = vsel %vm99, %v365, 0.0
  %v371 = vadd.f32 %v369, %v370
  %v372 = vsel %vm99, %v366, 0.0
  %v373 = vadd.f32 %v371, %v372
  %v374 = vrot.slane %v373, 4
  %v375 = vadd.f32 %v373, %v374
  %v376 = vrot.slane %v375, 2
  %v377 = vadd.f32 %v375, %v376
  %v378 = vrot.slane %v377, 1
  %v379 = vadd.f32 %v377, %v378
  %v380 = vmul.f32 %v379, 0.041666668
  %v381 = vsub.f32 %v327, %v380
  %v382 = vsub.f32 %v330, %v380
  %v383 = vsub.f32 %v333, %v380
  %v384 = vsub.f32 %v336, %v380
  %v385 = vmul.f32 %v381, %v381
  %v386 = vmul.f32 %v382, %v382
  %v387 = vmul.f32 %v383, %v383
  %v388 = vmul.f32 %v384, %v384
  %v389 = vmul.f32 %v385, %v346
  %v390 = vmul.f32 %v386, %v351
  %v391 = vmul.f32 %v387, %v356
  %v392 = vmul.f32 %v388, %v361
  %v393 = vsel %vm99, %v389, 0.0
  %v394 = vsel %vm99, %v390, 0.0
  %v395 = vadd.f32 %v393, %v394
  %v396 = vsel %vm99, %v391, 0.0
  %v397 = vadd.f32 %v395, %v396
  %v398 = vsel %vm99, %v392, 0.0
  %v399 = vadd.f32 %v397, %v398
  %v400 = vrot.slane %v399, 4
  %v401 = vadd.f32 %v399, %v400
  %v402 = vrot.slane %v401, 2
  %v403 = vadd.f32 %v401, %v402
  %v404 = vrot.slane %v403, 1
  %v405 = vadd.f32 %v403, %v404
  %v406 = vmul.f32 %v405, 0.041666668
  %v407 = vadd.f32 %v406, 1e-05
  %v408 = vrsqrt.pop %v407
  %v409 = vmul.f32 %v408, %v407
  %v410 = vmul.f32 %v409, %v408
  %v411 = vmul.f32 0.5, %v410
  %v412 = vsub.f32 1.5, %v411
  %v413 = vmul.f32 %v408, %v412
  %vm414 = vweird.f32 %v407
  %vm415 = vweird.f32 %v408
  %vm416 = vmor %vm414, %vm415
  %v417 = vsel %vm416, %v408, %v413
  %v418 = vmul.f32 %v381, %v417
  %v419 = vmul.f32 %v382, %v417
  %v420 = vmul.f32 %v383, %v417
  %v421 = vmul.f32 %v384, %v417
  %v422 = vld [vmem:[%s4 + $0x4] sm:$0x1]
  %v423 = vperm.slane %v422, 0
  %v424 = vmul.f32 %v418, %v423
  %v425 = vmul.f32 %v419, %v423
  %v426 = vmul.f32 %v420, %v423
  %v427 = vmul.f32 %v421, %v423
  %v428 = vld [vmem:[%s4 + $0x7] sm:$0x1]
  %v429 = vperm.slane %v428, 0
  %v430 = vadd.f32 %v424, %v429
  %v431 = vadd.f32 %v425, %v429
  %v432 = vadd.f32 %v426, %v429
  %v433 = vadd.f32 %v427, %v429
  %v434 = vmax.f32 %v430, 0.0
  %v435 = vmax.f32 %v431, 0.0
  %v436 = vmax.f32 %v432, 0.0
  %v437 = vmax.f32 %v433, 0.0
  %v442 = vrot.slane %v434, 1
  %v443 = vrot.slane %v435, 1
  %v444 = vsel %vm75, %v442, %v443
  %v445 = vrot.slane %v436, 1
  %v446 = vsel %vm75, %v443, %v445
  %v447 = vrot.slane %v437, 1
  %v448 = vsel %vm75, %v445, %v447
  %v451 = vsel %vm75, %v447, %v442
  %453 = vrot.lane.b32.xlu0 %v444, 32
  %v454 = vpop.permute.xlu0 %453
  %455 = vrot.lane.b32.xlu0 %v446, 32
  %v456 = vpop.permute.xlu0 %455
  %457 = vrot.lane.b32.xlu0 %v448, 32
  %v458 = vpop.permute.xlu0 %457
  %459 = vrot.lane.b32.xlu0 %v451, 32
  %v460 = vpop.permute.xlu0 %459
  %v465 = vsel %vm99, %v434, %v454
  %v466 = vsel %vm99, %v435, %v456
  %v467 = vsel %vm99, %v436, %v458
  %v468 = vsel %vm99, %v437, %v460
  %s469 = scalar_lea.vmem %s3, 128
  %v470 = vld [vmem:[%s469] sm:$0xff]
  %v471 = vld [vmem:[%s469 + $0x8] sm:$0xff]
  %v472 = vld [vmem:[%s469 + $0x10] sm:$0xff]
  %v473 = vld [vmem:[%s469 + $0x18] sm:$0xff]
  %v474 = vld [vmem:[%s469 + $0x20] sm:$0xff]
  %v475 = vld [vmem:[%s469 + $0x28] sm:$0xff]
  %v476 = vld [vmem:[%s469 + $0x30] sm:$0xff]
  %v477 = vld [vmem:[%s469 + $0x38] sm:$0xff]
  %v478 = vld [vmem:[%s4 + $0x2] sm:$0x1]
  %v479 = vperm.slane %v478, 0
  %v481 = vsel %vm114, %v465, 0
  %v484 = vsel %vm114, %v466, 0
  %v487 = vsel %vm114, %v467, 0
  %v490 = vsel %vm114, %v468, 0
  %492 = vmatpush.msra.mxu0 0.0
  %493 = vmatpush.msra.mxu0 0.0
  %494 = vmatpush.msra.mxu0 0.0
  %495 = vmatpush.msra.mxu0 0.0
  %496 = vmatpush.msra.mxu0 0.0
  %497 = vmatpush.msra.mxu0 0.0
  %498 = vmatpush.msra.mxu0 0.0
  %499 = vmatpush.msra.mxu0 0.0
  %500 = vmatpush.msra.mxu0 %v477
  %501 = vmatpush.msra.mxu0 %v476
  %502 = vmatpush.msra.mxu0 %v475
  %503 = vmatpush.msra.mxu0 %v474
  %504 = vmatpush.msra.mxu0 %v473
  %505 = vmatpush.msra.mxu0 %v472
  %506 = vmatpush.msra.mxu0 %v471
  %507 = vmatpush.msra.mxu0 %v470
  %508 = vmatmul.f32.gmra.mxu0 %v481
  %v509 = vpop.f32.mrf.mxu0
  %v510 = vadd.f32 %v479, %v509
  %511 = vmatmul.f32.gmra.mxu0 %v484
  %v512 = vpop.f32.mrf.mxu0
  %v513 = vadd.f32 %v479, %v512
  %514 = vmatmul.f32.gmra.mxu0 %v487
  %v515 = vpop.f32.mrf.mxu0
  %v516 = vadd.f32 %v479, %v515
  %517 = vmatmul.f32.gmra.mxu0 %v490
  %v518 = vpop.f32.mrf.mxu0
  %v519 = vadd.f32 %v479, %v518
  %520 = vdwg.mxu0
  %s521 = scalar_lea.vmem %s5, 64
  %v522 = vld [vmem:[%s521] sm:$0xff]
  %v523 = vld [vmem:[%s521 + $0x8] sm:$0xff]
  %v524 = vld [vmem:[%s521 + $0x10] sm:$0xff]
  %v525 = vld [vmem:[%s521 + $0x18] sm:$0xff]
  %527 = vset.pattern.permute.xlu0 0
  %528 = vperm.xlu0 %527, %v522
  %v529 = vpop.permute.xlu0 %528
  %532 = vset.pattern.permute.xlu0 0
  %533 = vperm.xlu0 %532, %v523
  %v534 = vpop.permute.xlu0 %533
  %537 = vset.pattern.permute.xlu0 0
  %538 = vperm.xlu0 %537, %v524
  %v539 = vpop.permute.xlu0 %538
  %542 = vset.pattern.permute.xlu0 0
  %543 = vperm.xlu0 %542, %v525
  %v544 = vpop.permute.xlu0 %543
  %v546 = vmul.f32 %v510, %v529
  %v547 = vmul.f32 %v513, %v534
  %v548 = vmul.f32 %v516, %v539
  %v549 = vmul.f32 %v519, %v544
  %v550 = vsel %vm99, %v546, 0.0
  %v551 = vsel %vm99, %v547, 0.0
  %v552 = vadd.f32 %v550, %v551
  %v553 = vsel %vm99, %v548, 0.0
  %v554 = vadd.f32 %v552, %v553
  %v555 = vsel %vm99, %v549, 0.0
  %v556 = vadd.f32 %v554, %v555
  %v557 = vrot.slane %v556, 4
  %v558 = vadd.f32 %v556, %v557
  %v559 = vrot.slane %v558, 2
  %v560 = vadd.f32 %v558, %v559
  %v561 = vrot.slane %v560, 1
  %v562 = vadd.f32 %v560, %v561
  %v563 = vmul.f32 %v562, 0.05
  %v564 = vsub.f32 %v510, %v563
  %v565 = vsub.f32 %v513, %v563
  %v566 = vsub.f32 %v516, %v563
  %v567 = vsub.f32 %v519, %v563
  %v568 = vmul.f32 %v564, %v564
  %v569 = vmul.f32 %v565, %v565
  %v570 = vmul.f32 %v566, %v566
  %v571 = vmul.f32 %v567, %v567
  %v572 = vmul.f32 %v568, %v529
  %v573 = vmul.f32 %v569, %v534
  %v574 = vmul.f32 %v570, %v539
  %v575 = vmul.f32 %v571, %v544
  %v576 = vsel %vm99, %v572, 0.0
  %v577 = vsel %vm99, %v573, 0.0
  %v578 = vadd.f32 %v576, %v577
  %v579 = vsel %vm99, %v574, 0.0
  %v580 = vadd.f32 %v578, %v579
  %v581 = vsel %vm99, %v575, 0.0
  %v582 = vadd.f32 %v580, %v581
  %v583 = vrot.slane %v582, 4
  %v584 = vadd.f32 %v582, %v583
  %v585 = vrot.slane %v584, 2
  %v586 = vadd.f32 %v584, %v585
  %v587 = vrot.slane %v586, 1
  %v588 = vadd.f32 %v586, %v587
  %v589 = vmul.f32 %v588, 0.05
  %v590 = vadd.f32 %v589, 1e-05
  %v591 = vrsqrt.pop %v590
  %v592 = vmul.f32 %v591, %v590
  %v593 = vmul.f32 %v592, %v591
  %v594 = vmul.f32 0.5, %v593
  %v595 = vsub.f32 1.5, %v594
  %v596 = vmul.f32 %v591, %v595
  %vm597 = vweird.f32 %v590
  %vm598 = vweird.f32 %v591
  %vm599 = vmor %vm597, %vm598
  %v600 = vsel %vm599, %v591, %v596
  %v601 = vmul.f32 %v564, %v600
  %v602 = vmul.f32 %v565, %v600
  %v603 = vmul.f32 %v566, %v600
  %v604 = vmul.f32 %v567, %v600
  %v605 = vld [vmem:[%s4 + $0x5] sm:$0x1]
  %v606 = vperm.slane %v605, 0
  %v607 = vmul.f32 %v601, %v606
  %v608 = vmul.f32 %v602, %v606
  %v609 = vmul.f32 %v603, %v606
  %v610 = vmul.f32 %v604, %v606
  %v611 = vld [vmem:[%s4 + $0x8] sm:$0x1]
  %v612 = vperm.slane %v611, 0
  %v613 = vadd.f32 %v607, %v612
  %v614 = vadd.f32 %v608, %v612
  %v615 = vadd.f32 %v609, %v612
  %v616 = vadd.f32 %v610, %v612
  %v617 = vmax.f32 %v613, 0.0
  %v618 = vmax.f32 %v614, 0.0
  %v619 = vmax.f32 %v615, 0.0
  %v620 = vmax.f32 %v616, 0.0
  %v621 = vld [vmem:[%s6] sm:$0xf]
  %v623 = vsel %vm99, %v621, 0
  %625 = vmatpush.msra.mxu0 0.0
  %626 = vmatpush.msra.mxu0 0.0
  %627 = vmatpush.msra.mxu0 0.0
  %628 = vmatpush.msra.mxu0 0.0
  %629 = vmatpush.msra.mxu0 0.0
  %630 = vmatpush.msra.mxu0 0.0
  %631 = vmatpush.msra.mxu0 0.0
  %632 = vmatpush.msra.mxu0 0.0
  %633 = vmatpush.msra.mxu0 0.0
  %634 = vmatpush.msra.mxu0 0.0
  %635 = vmatpush.msra.mxu0 0.0
  %636 = vmatpush.msra.mxu0 0.0
  %637 = vmatpush.msra.mxu0 %v620
  %638 = vmatpush.msra.mxu0 %v619
  %639 = vmatpush.msra.mxu0 %v618
  %640 = vmatpush.msra.mxu0 %v617
  %641 = vmatmul.f32.gmra.mxu0 %v623
  %v642 = vpop.f32.mrf.mxu0
  %v643 = vadd.f32 0.0, %v642
  %644 = vdwg.mxu0
  %v645 = vld [vmem:[%s1] sm:$0xff]
  %v646 = vld [vmem:[%s1 + $0x8] sm:$0xff]
  %v647 = vld [vmem:[%s1 + $0x10] sm:$0xff]
  %v648 = vld [vmem:[%s1 + $0x18] sm:$0xff]
  %v649 = vld [vmem:[%s1 + $0x20] sm:$0xff]
  %v650 = vld [vmem:[%s1 + $0x28] sm:$0xff]
  %v657 = vrot.slane %v645, 1
  %v658 = vrot.slane %v646, 1
  %v659 = vsel %vm75, %v657, %v658
  %v660 = vrot.slane %v647, 1
  %v661 = vsel %vm75, %v658, %v660
  %v662 = vrot.slane %v648, 1
  %v663 = vsel %vm75, %v660, %v662
  %v664 = vrot.slane %v649, 1
  %v665 = vsel %vm75, %v662, %v664
  %v666 = vrot.slane %v650, 1
  %v667 = vsel %vm75, %v664, %v666
  %v670 = vsel %vm75, %v666, %v657
  %672 = vrot.lane.b32.xlu0 %v659, 32
  %v673 = vpop.permute.xlu0 %672
  %674 = vrot.lane.b32.xlu0 %v661, 32
  %v675 = vpop.permute.xlu0 %674
  %676 = vrot.lane.b32.xlu0 %v663, 32
  %v677 = vpop.permute.xlu0 %676
  %678 = vrot.lane.b32.xlu0 %v665, 32
  %v679 = vpop.permute.xlu0 %678
  %680 = vrot.lane.b32.xlu0 %v667, 32
  %v681 = vpop.permute.xlu0 %680
  %682 = vrot.lane.b32.xlu0 %v670, 32
  %v683 = vpop.permute.xlu0 %682
  %v690 = vsel %vm99, %v645, %v673
  %v691 = vsel %vm99, %v646, %v675
  %v692 = vsel %vm99, %v647, %v677
  %v693 = vsel %vm99, %v648, %v679
  %v694 = vsel %vm99, %v649, %v681
  %v695 = vsel %vm99, %v650, %v683
  %v696 = vld [vmem:[%s7] sm:$0xff]
  %v697 = vld [vmem:[%s7 + $0x8] sm:$0xff]
  %v698 = vld [vmem:[%s7 + $0x10] sm:$0xff]
  %v699 = vld [vmem:[%s7 + $0x18] sm:$0xff]
  %v700 = vld [vmem:[%s7 + $0x20] sm:$0xff]
  %v701 = vld [vmem:[%s7 + $0x28] sm:$0xff]
  %v702 = vld [vmem:[%s7 + $0x30] sm:$0xff]
  %v703 = vld [vmem:[%s7 + $0x38] sm:$0xff]
  %v704 = vld [vmem:[%s8] sm:$0x1]
  %v705 = vperm.slane %v704, 0
  %v707 = vsel %vm114, %v690, 0
  %v710 = vsel %vm114, %v691, 0
  %v713 = vsel %vm114, %v692, 0
  %v716 = vsel %vm114, %v693, 0
  %v719 = vsel %vm114, %v694, 0
  %v722 = vsel %vm114, %v695, 0
  %724 = vmatpush.msra.mxu0 0.0
  %725 = vmatpush.msra.mxu0 0.0
  %726 = vmatpush.msra.mxu0 0.0
  %727 = vmatpush.msra.mxu0 0.0
  %728 = vmatpush.msra.mxu0 0.0
  %729 = vmatpush.msra.mxu0 0.0
  %730 = vmatpush.msra.mxu0 0.0
  %731 = vmatpush.msra.mxu0 0.0
  %732 = vmatpush.msra.mxu0 %v703
  %733 = vmatpush.msra.mxu0 %v702
  %734 = vmatpush.msra.mxu0 %v701
  %735 = vmatpush.msra.mxu0 %v700
  %736 = vmatpush.msra.mxu0 %v699
  %737 = vmatpush.msra.mxu0 %v698
  %738 = vmatpush.msra.mxu0 %v697
  %739 = vmatpush.msra.mxu0 %v696
  %740 = vmatmul.f32.gmra.mxu0 %v707
  %v741 = vpop.f32.mrf.mxu0
  %v742 = vadd.f32 %v705, %v741
  %743 = vmatmul.f32.gmra.mxu0 %v710
  %v744 = vpop.f32.mrf.mxu0
  %v745 = vadd.f32 %v705, %v744
  %746 = vmatmul.f32.gmra.mxu0 %v713
  %v747 = vpop.f32.mrf.mxu0
  %v748 = vadd.f32 %v705, %v747
  %749 = vmatmul.f32.gmra.mxu0 %v716
  %v750 = vpop.f32.mrf.mxu0
  %v751 = vadd.f32 %v705, %v750
  %752 = vmatmul.f32.gmra.mxu0 %v719
  %v753 = vpop.f32.mrf.mxu0
  %v754 = vadd.f32 %v705, %v753
  %755 = vmatmul.f32.gmra.mxu0 %v722
  %v756 = vpop.f32.mrf.mxu0
  %v757 = vadd.f32 %v705, %v756
  %758 = vdwg.mxu0
  %v759 = vld [vmem:[%s9] sm:$0xff]
  %v760 = vld [vmem:[%s9 + $0x8] sm:$0xff]
  %v761 = vld [vmem:[%s9 + $0x10] sm:$0xff]
  %v762 = vld [vmem:[%s9 + $0x18] sm:$0xff]
  %v763 = vld [vmem:[%s9 + $0x20] sm:$0xff]
  %v764 = vld [vmem:[%s9 + $0x28] sm:$0xff]
  %766 = vset.pattern.permute.xlu0 0
  %767 = vperm.xlu0 %766, %v759
  %v768 = vpop.permute.xlu0 %767
  %771 = vset.pattern.permute.xlu0 0
  %772 = vperm.xlu0 %771, %v760
  %v773 = vpop.permute.xlu0 %772
  %776 = vset.pattern.permute.xlu0 0
  %777 = vperm.xlu0 %776, %v761
  %v778 = vpop.permute.xlu0 %777
  %781 = vset.pattern.permute.xlu0 0
  %782 = vperm.xlu0 %781, %v762
  %v783 = vpop.permute.xlu0 %782
  %786 = vset.pattern.permute.xlu0 0
  %787 = vperm.xlu0 %786, %v763
  %v788 = vpop.permute.xlu0 %787
  %791 = vset.pattern.permute.xlu0 0
  %792 = vperm.xlu0 %791, %v764
  %v793 = vpop.permute.xlu0 %792
  %v795 = vmul.f32 %v742, %v768
  %v796 = vmul.f32 %v745, %v773
  %v797 = vmul.f32 %v748, %v778
  %v798 = vmul.f32 %v751, %v783
  %v799 = vmul.f32 %v754, %v788
  %v800 = vmul.f32 %v757, %v793
  %v801 = vsel %vm99, %v795, 0.0
  %v802 = vsel %vm99, %v796, 0.0
  %v803 = vadd.f32 %v801, %v802
  %v804 = vsel %vm99, %v797, 0.0
  %v805 = vadd.f32 %v803, %v804
  %v806 = vsel %vm99, %v798, 0.0
  %v807 = vadd.f32 %v805, %v806
  %v808 = vsel %vm99, %v799, 0.0
  %v809 = vadd.f32 %v807, %v808
  %v810 = vsel %vm99, %v800, 0.0
  %v811 = vadd.f32 %v809, %v810
  %v812 = vrot.slane %v811, 4
  %v813 = vadd.f32 %v811, %v812
  %v814 = vrot.slane %v813, 2
  %v815 = vadd.f32 %v813, %v814
  %v816 = vrot.slane %v815, 1
  %v817 = vadd.f32 %v815, %v816
  %v818 = vmul.f32 %v817, 0.022727273
  %v819 = vsub.f32 %v742, %v818
  %v820 = vsub.f32 %v745, %v818
  %v821 = vsub.f32 %v748, %v818
  %v822 = vsub.f32 %v751, %v818
  %v823 = vsub.f32 %v754, %v818
  %v824 = vsub.f32 %v757, %v818
  %v825 = vmul.f32 %v819, %v819
  %v826 = vmul.f32 %v820, %v820
  %v827 = vmul.f32 %v821, %v821
  %v828 = vmul.f32 %v822, %v822
  %v829 = vmul.f32 %v823, %v823
  %v830 = vmul.f32 %v824, %v824
  %v831 = vmul.f32 %v825, %v768
  %v832 = vmul.f32 %v826, %v773
  %v833 = vmul.f32 %v827, %v778
  %v834 = vmul.f32 %v828, %v783
  %v835 = vmul.f32 %v829, %v788
  %v836 = vmul.f32 %v830, %v793
  %v837 = vsel %vm99, %v831, 0.0
  %v838 = vsel %vm99, %v832, 0.0
  %v839 = vadd.f32 %v837, %v838
  %v840 = vsel %vm99, %v833, 0.0
  %v841 = vadd.f32 %v839, %v840
  %v842 = vsel %vm99, %v834, 0.0
  %v843 = vadd.f32 %v841, %v842
  %v844 = vsel %vm99, %v835, 0.0
  %v845 = vadd.f32 %v843, %v844
  %v846 = vsel %vm99, %v836, 0.0
  %v847 = vadd.f32 %v845, %v846
  %v848 = vrot.slane %v847, 4
  %v849 = vadd.f32 %v847, %v848
  %v850 = vrot.slane %v849, 2
  %v851 = vadd.f32 %v849, %v850
  %v852 = vrot.slane %v851, 1
  %v853 = vadd.f32 %v851, %v852
  %v854 = vmul.f32 %v853, 0.022727273
  %v855 = vadd.f32 %v854, 1e-05
  %v856 = vrsqrt.pop %v855
  %v857 = vmul.f32 %v856, %v855
  %v858 = vmul.f32 %v857, %v856
  %v859 = vmul.f32 0.5, %v858
  %v860 = vsub.f32 1.5, %v859
  %v861 = vmul.f32 %v856, %v860
  %vm862 = vweird.f32 %v855
  %vm863 = vweird.f32 %v856
  %vm864 = vmor %vm862, %vm863
  %v865 = vsel %vm864, %v856, %v861
  %v866 = vmul.f32 %v819, %v865
  %v867 = vmul.f32 %v820, %v865
  %v868 = vmul.f32 %v821, %v865
  %v869 = vmul.f32 %v822, %v865
  %v870 = vmul.f32 %v823, %v865
  %v871 = vmul.f32 %v824, %v865
  %v872 = vld [vmem:[%s8 + $0x3] sm:$0x1]
  %v873 = vperm.slane %v872, 0
  %v874 = vmul.f32 %v866, %v873
  %v875 = vmul.f32 %v867, %v873
  %v876 = vmul.f32 %v868, %v873
  %v877 = vmul.f32 %v869, %v873
  %v878 = vmul.f32 %v870, %v873
  %v879 = vmul.f32 %v871, %v873
  %v880 = vld [vmem:[%s8 + $0x6] sm:$0x1]
  %v881 = vperm.slane %v880, 0
  %v882 = vadd.f32 %v874, %v881
  %v883 = vadd.f32 %v875, %v881
  %v884 = vadd.f32 %v876, %v881
  %v885 = vadd.f32 %v877, %v881
  %v886 = vadd.f32 %v878, %v881
  %v887 = vadd.f32 %v879, %v881
  %v888 = vmax.f32 %v882, 0.0
  %v889 = vmax.f32 %v883, 0.0
  %v890 = vmax.f32 %v884, 0.0
  %v891 = vmax.f32 %v885, 0.0
  %v892 = vmax.f32 %v886, 0.0
  %v893 = vmax.f32 %v887, 0.0
  %v900 = vrot.slane %v888, 1
  %v901 = vrot.slane %v889, 1
  %v902 = vsel %vm75, %v900, %v901
  %v903 = vrot.slane %v890, 1
  %v904 = vsel %vm75, %v901, %v903
  %v905 = vrot.slane %v891, 1
  %v906 = vsel %vm75, %v903, %v905
  %v907 = vrot.slane %v892, 1
  %v908 = vsel %vm75, %v905, %v907
  %v909 = vrot.slane %v893, 1
  %v910 = vsel %vm75, %v907, %v909
  %v913 = vsel %vm75, %v909, %v900
  %915 = vrot.lane.b32.xlu0 %v902, 32
  %v916 = vpop.permute.xlu0 %915
  %917 = vrot.lane.b32.xlu0 %v904, 32
  %v918 = vpop.permute.xlu0 %917
  %919 = vrot.lane.b32.xlu0 %v906, 32
  %v920 = vpop.permute.xlu0 %919
  %921 = vrot.lane.b32.xlu0 %v908, 32
  %v922 = vpop.permute.xlu0 %921
  %923 = vrot.lane.b32.xlu0 %v910, 32
  %v924 = vpop.permute.xlu0 %923
  %925 = vrot.lane.b32.xlu0 %v913, 32
  %v926 = vpop.permute.xlu0 %925
  %v933 = vsel %vm99, %v888, %v916
  %v934 = vsel %vm99, %v889, %v918
  %v935 = vsel %vm99, %v890, %v920
  %v936 = vsel %vm99, %v891, %v922
  %v937 = vsel %vm99, %v892, %v924
  %v938 = vsel %vm99, %v893, %v926
  %s939 = scalar_lea.vmem %s7, 64
  %v940 = vld [vmem:[%s939] sm:$0xff]
  %v941 = vld [vmem:[%s939 + $0x8] sm:$0xff]
  %v942 = vld [vmem:[%s939 + $0x10] sm:$0xff]
  %v943 = vld [vmem:[%s939 + $0x18] sm:$0xff]
  %v944 = vld [vmem:[%s939 + $0x20] sm:$0xff]
  %v945 = vld [vmem:[%s939 + $0x28] sm:$0xff]
  %v946 = vld [vmem:[%s939 + $0x30] sm:$0xff]
  %v947 = vld [vmem:[%s939 + $0x38] sm:$0xff]
  %v948 = vld [vmem:[%s8 + $0x1] sm:$0x1]
  %v949 = vperm.slane %v948, 0
  %v951 = vsel %vm114, %v933, 0
  %v954 = vsel %vm114, %v934, 0
  %v957 = vsel %vm114, %v935, 0
  %v960 = vsel %vm114, %v936, 0
  %v963 = vsel %vm114, %v937, 0
  %v966 = vsel %vm114, %v938, 0
  %968 = vmatpush.msra.mxu0 0.0
  %969 = vmatpush.msra.mxu0 0.0
  %970 = vmatpush.msra.mxu0 0.0
  %971 = vmatpush.msra.mxu0 0.0
  %972 = vmatpush.msra.mxu0 0.0
  %973 = vmatpush.msra.mxu0 0.0
  %974 = vmatpush.msra.mxu0 0.0
  %975 = vmatpush.msra.mxu0 0.0
  %976 = vmatpush.msra.mxu0 %v947
  %977 = vmatpush.msra.mxu0 %v946
  %978 = vmatpush.msra.mxu0 %v945
  %979 = vmatpush.msra.mxu0 %v944
  %980 = vmatpush.msra.mxu0 %v943
  %981 = vmatpush.msra.mxu0 %v942
  %982 = vmatpush.msra.mxu0 %v941
  %983 = vmatpush.msra.mxu0 %v940
  %984 = vmatmul.f32.gmra.mxu0 %v951
  %v985 = vpop.f32.mrf.mxu0
  %v986 = vadd.f32 %v949, %v985
  %987 = vmatmul.f32.gmra.mxu0 %v954
  %v988 = vpop.f32.mrf.mxu0
  %v989 = vadd.f32 %v949, %v988
  %990 = vmatmul.f32.gmra.mxu0 %v957
  %v991 = vpop.f32.mrf.mxu0
  %v992 = vadd.f32 %v949, %v991
  %993 = vmatmul.f32.gmra.mxu0 %v960
  %v994 = vpop.f32.mrf.mxu0
  %v995 = vadd.f32 %v949, %v994
  %996 = vmatmul.f32.gmra.mxu0 %v963
  %v997 = vpop.f32.mrf.mxu0
  %v998 = vadd.f32 %v949, %v997
  %999 = vmatmul.f32.gmra.mxu0 %v966
  %v1000 = vpop.f32.mrf.mxu0
  %v1001 = vadd.f32 %v949, %v1000
  %1002 = vdwg.mxu0
  %s1003 = scalar_lea.vmem %s9, 48
  %v1004 = vld [vmem:[%s1003] sm:$0xff]
  %v1005 = vld [vmem:[%s1003 + $0x8] sm:$0xff]
  %v1006 = vld [vmem:[%s1003 + $0x10] sm:$0xff]
  %v1007 = vld [vmem:[%s1003 + $0x18] sm:$0xff]
  %v1008 = vld [vmem:[%s1003 + $0x20] sm:$0xff]
  %v1009 = vld [vmem:[%s1003 + $0x28] sm:$0xff]
  %1011 = vset.pattern.permute.xlu0 0
  %1012 = vperm.xlu0 %1011, %v1004
  %v1013 = vpop.permute.xlu0 %1012
  %1016 = vset.pattern.permute.xlu0 0
  %1017 = vperm.xlu0 %1016, %v1005
  %v1018 = vpop.permute.xlu0 %1017
  %1021 = vset.pattern.permute.xlu0 0
  %1022 = vperm.xlu0 %1021, %v1006
  %v1023 = vpop.permute.xlu0 %1022
  %1026 = vset.pattern.permute.xlu0 0
  %1027 = vperm.xlu0 %1026, %v1007
  %v1028 = vpop.permute.xlu0 %1027
  %1031 = vset.pattern.permute.xlu0 0
  %1032 = vperm.xlu0 %1031, %v1008
  %v1033 = vpop.permute.xlu0 %1032
  %1036 = vset.pattern.permute.xlu0 0
  %1037 = vperm.xlu0 %1036, %v1009
  %v1038 = vpop.permute.xlu0 %1037
  %v1040 = vmul.f32 %v986, %v1013
  %v1041 = vmul.f32 %v989, %v1018
  %v1042 = vmul.f32 %v992, %v1023
  %v1043 = vmul.f32 %v995, %v1028
  %v1044 = vmul.f32 %v998, %v1033
  %v1045 = vmul.f32 %v1001, %v1038
  %v1046 = vsel %vm99, %v1040, 0.0
  %v1047 = vsel %vm99, %v1041, 0.0
  %v1048 = vadd.f32 %v1046, %v1047
  %v1049 = vsel %vm99, %v1042, 0.0
  %v1050 = vadd.f32 %v1048, %v1049
  %v1051 = vsel %vm99, %v1043, 0.0
  %v1052 = vadd.f32 %v1050, %v1051
  %v1053 = vsel %vm99, %v1044, 0.0
  %v1054 = vadd.f32 %v1052, %v1053
  %v1055 = vsel %vm99, %v1045, 0.0
  %v1056 = vadd.f32 %v1054, %v1055
  %v1057 = vrot.slane %v1056, 4
  %v1058 = vadd.f32 %v1056, %v1057
  %v1059 = vrot.slane %v1058, 2
  %v1060 = vadd.f32 %v1058, %v1059
  %v1061 = vrot.slane %v1060, 1
  %v1062 = vadd.f32 %v1060, %v1061
  %v1063 = vmul.f32 %v1062, 0.025
  %v1064 = vsub.f32 %v986, %v1063
  %v1065 = vsub.f32 %v989, %v1063
  %v1066 = vsub.f32 %v992, %v1063
  %v1067 = vsub.f32 %v995, %v1063
  %v1068 = vsub.f32 %v998, %v1063
  %v1069 = vsub.f32 %v1001, %v1063
  %v1070 = vmul.f32 %v1064, %v1064
  %v1071 = vmul.f32 %v1065, %v1065
  %v1072 = vmul.f32 %v1066, %v1066
  %v1073 = vmul.f32 %v1067, %v1067
  %v1074 = vmul.f32 %v1068, %v1068
  %v1075 = vmul.f32 %v1069, %v1069
  %v1076 = vmul.f32 %v1070, %v1013
  %v1077 = vmul.f32 %v1071, %v1018
  %v1078 = vmul.f32 %v1072, %v1023
  %v1079 = vmul.f32 %v1073, %v1028
  %v1080 = vmul.f32 %v1074, %v1033
  %v1081 = vmul.f32 %v1075, %v1038
  %v1082 = vsel %vm99, %v1076, 0.0
  %v1083 = vsel %vm99, %v1077, 0.0
  %v1084 = vadd.f32 %v1082, %v1083
  %v1085 = vsel %vm99, %v1078, 0.0
  %v1086 = vadd.f32 %v1084, %v1085
  %v1087 = vsel %vm99, %v1079, 0.0
  %v1088 = vadd.f32 %v1086, %v1087
  %v1089 = vsel %vm99, %v1080, 0.0
  %v1090 = vadd.f32 %v1088, %v1089
  %v1091 = vsel %vm99, %v1081, 0.0
  %v1092 = vadd.f32 %v1090, %v1091
  %v1093 = vrot.slane %v1092, 4
  %v1094 = vadd.f32 %v1092, %v1093
  %v1095 = vrot.slane %v1094, 2
  %v1096 = vadd.f32 %v1094, %v1095
  %v1097 = vrot.slane %v1096, 1
  %v1098 = vadd.f32 %v1096, %v1097
  %v1099 = vmul.f32 %v1098, 0.025
  %v1100 = vadd.f32 %v1099, 1e-05
  %v1101 = vrsqrt.pop %v1100
  %v1102 = vmul.f32 %v1101, %v1100
  %v1103 = vmul.f32 %v1102, %v1101
  %v1104 = vmul.f32 0.5, %v1103
  %v1105 = vsub.f32 1.5, %v1104
  %v1106 = vmul.f32 %v1101, %v1105
  %vm1107 = vweird.f32 %v1100
  %vm1108 = vweird.f32 %v1101
  %vm1109 = vmor %vm1107, %vm1108
  %v1110 = vsel %vm1109, %v1101, %v1106
  %v1111 = vmul.f32 %v1064, %v1110
  %v1112 = vmul.f32 %v1065, %v1110
  %v1113 = vmul.f32 %v1066, %v1110
  %v1114 = vmul.f32 %v1067, %v1110
  %v1115 = vmul.f32 %v1068, %v1110
  %v1116 = vmul.f32 %v1069, %v1110
  %v1117 = vld [vmem:[%s8 + $0x4] sm:$0x1]
  %v1118 = vperm.slane %v1117, 0
  %v1119 = vmul.f32 %v1111, %v1118
  %v1120 = vmul.f32 %v1112, %v1118
  %v1121 = vmul.f32 %v1113, %v1118
  %v1122 = vmul.f32 %v1114, %v1118
  %v1123 = vmul.f32 %v1115, %v1118
  %v1124 = vmul.f32 %v1116, %v1118
  %v1125 = vld [vmem:[%s8 + $0x7] sm:$0x1]
  %v1126 = vperm.slane %v1125, 0
  %v1127 = vadd.f32 %v1119, %v1126
  %v1128 = vadd.f32 %v1120, %v1126
  %v1129 = vadd.f32 %v1121, %v1126
  %v1130 = vadd.f32 %v1122, %v1126
  %v1131 = vadd.f32 %v1123, %v1126
  %v1132 = vadd.f32 %v1124, %v1126
  %v1133 = vmax.f32 %v1127, 0.0
  %v1134 = vmax.f32 %v1128, 0.0
  %v1135 = vmax.f32 %v1129, 0.0
  %v1136 = vmax.f32 %v1130, 0.0
  %v1137 = vmax.f32 %v1131, 0.0
  %v1138 = vmax.f32 %v1132, 0.0
  %v1145 = vrot.slane %v1133, 1
  %v1146 = vrot.slane %v1134, 1
  %v1147 = vsel %vm75, %v1145, %v1146
  %v1148 = vrot.slane %v1135, 1
  %v1149 = vsel %vm75, %v1146, %v1148
  %v1150 = vrot.slane %v1136, 1
  %v1151 = vsel %vm75, %v1148, %v1150
  %v1152 = vrot.slane %v1137, 1
  %v1153 = vsel %vm75, %v1150, %v1152
  %v1154 = vrot.slane %v1138, 1
  %v1155 = vsel %vm75, %v1152, %v1154
  %v1158 = vsel %vm75, %v1154, %v1145
  %1160 = vrot.lane.b32.xlu0 %v1147, 32
  %v1161 = vpop.permute.xlu0 %1160
  %1162 = vrot.lane.b32.xlu0 %v1149, 32
  %v1163 = vpop.permute.xlu0 %1162
  %1164 = vrot.lane.b32.xlu0 %v1151, 32
  %v1165 = vpop.permute.xlu0 %1164
  %1166 = vrot.lane.b32.xlu0 %v1153, 32
  %v1167 = vpop.permute.xlu0 %1166
  %1168 = vrot.lane.b32.xlu0 %v1155, 32
  %v1169 = vpop.permute.xlu0 %1168
  %1170 = vrot.lane.b32.xlu0 %v1158, 32
  %v1171 = vpop.permute.xlu0 %1170
  %v1178 = vsel %vm99, %v1133, %v1161
  %v1179 = vsel %vm99, %v1134, %v1163
  %v1180 = vsel %vm99, %v1135, %v1165
  %v1181 = vsel %vm99, %v1136, %v1167
  %v1182 = vsel %vm99, %v1137, %v1169
  %v1183 = vsel %vm99, %v1138, %v1171
  %s1184 = scalar_lea.vmem %s7, 128
  %v1185 = vld [vmem:[%s1184] sm:$0xff]
  %v1186 = vld [vmem:[%s1184 + $0x8] sm:$0xff]
  %v1187 = vld [vmem:[%s1184 + $0x10] sm:$0xff]
  %v1188 = vld [vmem:[%s1184 + $0x18] sm:$0xff]
  %v1189 = vld [vmem:[%s1184 + $0x20] sm:$0xff]
  %v1190 = vld [vmem:[%s1184 + $0x28] sm:$0xff]
  %v1191 = vld [vmem:[%s1184 + $0x30] sm:$0xff]
  %v1192 = vld [vmem:[%s1184 + $0x38] sm:$0xff]
  %v1193 = vld [vmem:[%s8 + $0x2] sm:$0x1]
  %v1194 = vperm.slane %v1193, 0
  %v1196 = vsel %vm114, %v1178, 0
  %v1199 = vsel %vm114, %v1179, 0
  %v1202 = vsel %vm114, %v1180, 0
  %v1205 = vsel %vm114, %v1181, 0
  %v1208 = vsel %vm114, %v1182, 0
  %v1211 = vsel %vm114, %v1183, 0
  %1213 = vmatpush.msra.mxu0 0.0
  %1214 = vmatpush.msra.mxu0 0.0
  %1215 = vmatpush.msra.mxu0 0.0
  %1216 = vmatpush.msra.mxu0 0.0
  %1217 = vmatpush.msra.mxu0 0.0
  %1218 = vmatpush.msra.mxu0 0.0
  %1219 = vmatpush.msra.mxu0 0.0
  %1220 = vmatpush.msra.mxu0 0.0
  %1221 = vmatpush.msra.mxu0 %v1192
  %1222 = vmatpush.msra.mxu0 %v1191
  %1223 = vmatpush.msra.mxu0 %v1190
  %1224 = vmatpush.msra.mxu0 %v1189
  %1225 = vmatpush.msra.mxu0 %v1188
  %1226 = vmatpush.msra.mxu0 %v1187
  %1227 = vmatpush.msra.mxu0 %v1186
  %1228 = vmatpush.msra.mxu0 %v1185
  %1229 = vmatmul.f32.gmra.mxu0 %v1196
  %v1230 = vpop.f32.mrf.mxu0
  %v1231 = vadd.f32 %v1194, %v1230
  %1232 = vmatmul.f32.gmra.mxu0 %v1199
  %v1233 = vpop.f32.mrf.mxu0
  %v1234 = vadd.f32 %v1194, %v1233
  %1235 = vmatmul.f32.gmra.mxu0 %v1202
  %v1236 = vpop.f32.mrf.mxu0
  %v1237 = vadd.f32 %v1194, %v1236
  %1238 = vmatmul.f32.gmra.mxu0 %v1205
  %v1239 = vpop.f32.mrf.mxu0
  %v1240 = vadd.f32 %v1194, %v1239
  %1241 = vmatmul.f32.gmra.mxu0 %v1208
  %v1242 = vpop.f32.mrf.mxu0
  %v1243 = vadd.f32 %v1194, %v1242
  %1244 = vmatmul.f32.gmra.mxu0 %v1211
  %v1245 = vpop.f32.mrf.mxu0
  %v1246 = vadd.f32 %v1194, %v1245
  %1247 = vdwg.mxu0
  %s1248 = scalar_lea.vmem %s9, 96
  %v1249 = vld [vmem:[%s1248] sm:$0xff]
  %v1250 = vld [vmem:[%s1248 + $0x8] sm:$0xff]
  %v1251 = vld [vmem:[%s1248 + $0x10] sm:$0xff]
  %v1252 = vld [vmem:[%s1248 + $0x18] sm:$0xff]
  %v1253 = vld [vmem:[%s1248 + $0x20] sm:$0xff]
  %v1254 = vld [vmem:[%s1248 + $0x28] sm:$0xff]
  %1256 = vset.pattern.permute.xlu0 0
  %1257 = vperm.xlu0 %1256, %v1249
  %v1258 = vpop.permute.xlu0 %1257
  %1261 = vset.pattern.permute.xlu0 0
  %1262 = vperm.xlu0 %1261, %v1250
  %v1263 = vpop.permute.xlu0 %1262
  %1266 = vset.pattern.permute.xlu0 0
  %1267 = vperm.xlu0 %1266, %v1251
  %v1268 = vpop.permute.xlu0 %1267
  %1271 = vset.pattern.permute.xlu0 0
  %1272 = vperm.xlu0 %1271, %v1252
  %v1273 = vpop.permute.xlu0 %1272
  %1276 = vset.pattern.permute.xlu0 0
  %1277 = vperm.xlu0 %1276, %v1253
  %v1278 = vpop.permute.xlu0 %1277
  %1281 = vset.pattern.permute.xlu0 0
  %1282 = vperm.xlu0 %1281, %v1254
  %v1283 = vpop.permute.xlu0 %1282
  %v1285 = vmul.f32 %v1231, %v1258
  %v1286 = vmul.f32 %v1234, %v1263
  %v1287 = vmul.f32 %v1237, %v1268
  %v1288 = vmul.f32 %v1240, %v1273
  %v1289 = vmul.f32 %v1243, %v1278
  %v1290 = vmul.f32 %v1246, %v1283
  %v1291 = vsel %vm99, %v1285, 0.0
  %v1292 = vsel %vm99, %v1286, 0.0
  %v1293 = vadd.f32 %v1291, %v1292
  %v1294 = vsel %vm99, %v1287, 0.0
  %v1295 = vadd.f32 %v1293, %v1294
  %v1296 = vsel %vm99, %v1288, 0.0
  %v1297 = vadd.f32 %v1295, %v1296
  %v1298 = vsel %vm99, %v1289, 0.0
  %v1299 = vadd.f32 %v1297, %v1298
  %v1300 = vsel %vm99, %v1290, 0.0
  %v1301 = vadd.f32 %v1299, %v1300
  %v1302 = vrot.slane %v1301, 4
  %v1303 = vadd.f32 %v1301, %v1302
  %v1304 = vrot.slane %v1303, 2
  %v1305 = vadd.f32 %v1303, %v1304
  %v1306 = vrot.slane %v1305, 1
  %v1307 = vadd.f32 %v1305, %v1306
  %v1308 = vmul.f32 %v1307, 0.027777778
  %v1309 = vsub.f32 %v1231, %v1308
  %v1310 = vsub.f32 %v1234, %v1308
  %v1311 = vsub.f32 %v1237, %v1308
  %v1312 = vsub.f32 %v1240, %v1308
  %v1313 = vsub.f32 %v1243, %v1308
  %v1314 = vsub.f32 %v1246, %v1308
  %v1315 = vmul.f32 %v1309, %v1309
  %v1316 = vmul.f32 %v1310, %v1310
  %v1317 = vmul.f32 %v1311, %v1311
  %v1318 = vmul.f32 %v1312, %v1312
  %v1319 = vmul.f32 %v1313, %v1313
  %v1320 = vmul.f32 %v1314, %v1314
  %v1321 = vmul.f32 %v1315, %v1258
  %v1322 = vmul.f32 %v1316, %v1263
  %v1323 = vmul.f32 %v1317, %v1268
  %v1324 = vmul.f32 %v1318, %v1273
  %v1325 = vmul.f32 %v1319, %v1278
  %v1326 = vmul.f32 %v1320, %v1283
  %v1327 = vsel %vm99, %v1321, 0.0
  %v1328 = vsel %vm99, %v1322, 0.0
  %v1329 = vadd.f32 %v1327, %v1328
  %v1330 = vsel %vm99, %v1323, 0.0
  %v1331 = vadd.f32 %v1329, %v1330
  %v1332 = vsel %vm99, %v1324, 0.0
  %v1333 = vadd.f32 %v1331, %v1332
  %v1334 = vsel %vm99, %v1325, 0.0
  %v1335 = vadd.f32 %v1333, %v1334
  %v1336 = vsel %vm99, %v1326, 0.0
  %v1337 = vadd.f32 %v1335, %v1336
  %v1338 = vrot.slane %v1337, 4
  %v1339 = vadd.f32 %v1337, %v1338
  %v1340 = vrot.slane %v1339, 2
  %v1341 = vadd.f32 %v1339, %v1340
  %v1342 = vrot.slane %v1341, 1
  %v1343 = vadd.f32 %v1341, %v1342
  %v1344 = vmul.f32 %v1343, 0.027777778
  %v1345 = vadd.f32 %v1344, 1e-05
  %v1346 = vrsqrt.pop %v1345
  %v1347 = vmul.f32 %v1346, %v1345
  %v1348 = vmul.f32 %v1347, %v1346
  %v1349 = vmul.f32 0.5, %v1348
  %v1350 = vsub.f32 1.5, %v1349
  %v1351 = vmul.f32 %v1346, %v1350
  %vm1352 = vweird.f32 %v1345
  %vm1353 = vweird.f32 %v1346
  %vm1354 = vmor %vm1352, %vm1353
  %v1355 = vsel %vm1354, %v1346, %v1351
  %v1356 = vmul.f32 %v1309, %v1355
  %v1357 = vmul.f32 %v1310, %v1355
  %v1358 = vmul.f32 %v1311, %v1355
  %v1359 = vmul.f32 %v1312, %v1355
  %v1360 = vmul.f32 %v1313, %v1355
  %v1361 = vmul.f32 %v1314, %v1355
  %v1362 = vld [vmem:[%s8 + $0x5] sm:$0x1]
  %v1363 = vperm.slane %v1362, 0
  %v1364 = vmul.f32 %v1356, %v1363
  %v1365 = vmul.f32 %v1357, %v1363
  %v1366 = vmul.f32 %v1358, %v1363
  %v1367 = vmul.f32 %v1359, %v1363
  %v1368 = vmul.f32 %v1360, %v1363
  %v1369 = vmul.f32 %v1361, %v1363
  %v1370 = vld [vmem:[%s8 + $0x8] sm:$0x1]
  %v1371 = vperm.slane %v1370, 0
  %v1372 = vadd.f32 %v1364, %v1371
  %v1373 = vadd.f32 %v1365, %v1371
  %v1374 = vadd.f32 %v1366, %v1371
  %v1375 = vadd.f32 %v1367, %v1371
  %v1376 = vadd.f32 %v1368, %v1371
  %v1377 = vadd.f32 %v1369, %v1371
  %v1378 = vmax.f32 %v1372, 0.0
  %v1379 = vmax.f32 %v1373, 0.0
  %v1380 = vmax.f32 %v1374, 0.0
  %v1381 = vmax.f32 %v1375, 0.0
  %v1382 = vmax.f32 %v1376, 0.0
  %v1383 = vmax.f32 %v1377, 0.0
  %v1384 = vld [vmem:[%s10] sm:$0xf]
  %vm1385 = vcmask 392192
  %v1387 = vsel %vm1385, %v1384, 0
  %1389 = vmatpush.msra.mxu0 0.0
  %1390 = vmatpush.msra.mxu0 0.0
  %1391 = vmatpush.msra.mxu0 0.0
  %1392 = vmatpush.msra.mxu0 0.0
  %1393 = vmatpush.msra.mxu0 0.0
  %1394 = vmatpush.msra.mxu0 0.0
  %1395 = vmatpush.msra.mxu0 0.0
  %1396 = vmatpush.msra.mxu0 0.0
  %1397 = vmatpush.msra.mxu0 0.0
  %1398 = vmatpush.msra.mxu0 0.0
  %1399 = vmatpush.msra.mxu0 %v1383
  %1400 = vmatpush.msra.mxu0 %v1382
  %1401 = vmatpush.msra.mxu0 %v1381
  %1402 = vmatpush.msra.mxu0 %v1380
  %1403 = vmatpush.msra.mxu0 %v1379
  %1404 = vmatpush.msra.mxu0 %v1378
  %1405 = vmatmul.f32.gmra.mxu0 %v1387
  %v1406 = vpop.f32.mrf.mxu0
  %v1407 = vadd.f32 0.0, %v1406
  %1408 = vdwg.mxu0
  %v1409 = vld [vmem:[%s2] sm:$0xf]
  %v1410 = vld [vmem:[%s11] sm:$0xff]
  %v1411 = vld [vmem:[%s11 + $0x8] sm:$0xff]
  %v1412 = vld [vmem:[%s14] sm:$0x1]
  %v1413 = vperm.slane %v1412, 0
  %vm1414 = vcmask 130048
  %v1416 = vsel %vm1414, %v1409, 0
  %1418 = vmatpush.msra.mxu0 0.0
  %1419 = vmatpush.msra.mxu0 0.0
  %1420 = vmatpush.msra.mxu0 0.0
  %1421 = vmatpush.msra.mxu0 0.0
  %1422 = vmatpush.msra.mxu0 0.0
  %1423 = vmatpush.msra.mxu0 0.0
  %1424 = vmatpush.msra.mxu0 0.0
  %1425 = vmatpush.msra.mxu0 0.0
  %1426 = vmatpush.msra.mxu0 0.0
  %1427 = vmatpush.msra.mxu0 0.0
  %1428 = vmatpush.msra.mxu0 0.0
  %1429 = vmatpush.msra.mxu0 0.0
  %1430 = vmatpush.msra.mxu0 0.0
  %1431 = vmatpush.msra.mxu0 0.0
  %1432 = vmatpush.msra.mxu0 %v1411
  %1433 = vmatpush.msra.mxu0 %v1410
  %1434 = vmatmul.f32.gmra.mxu0 %v1416
  %v1435 = vpop.f32.mrf.mxu0
  %v1436 = vadd.f32 %v1413, %v1435
  %1437 = vdwg.mxu0
  %v1438 = vmax.f32 %v1436, 0.0
  %v1439 = vld [vmem:[%s12] sm:$0xff]
  %v1440 = vld [vmem:[%s12 + $0x8] sm:$0xff]
  %v1441 = vld [vmem:[%s12 + $0x10] sm:$0xff]
  %v1442 = vld [vmem:[%s12 + $0x18] sm:$0xff]
  %v1443 = vld [vmem:[%s12 + $0x20] sm:$0xff]
  %v1444 = vld [vmem:[%s12 + $0x28] sm:$0xff]
  %v1445 = vld [vmem:[%s12 + $0x30] sm:$0xff]
  %v1446 = vld [vmem:[%s12 + $0x38] sm:$0xff]
  %v1447 = vld [vmem:[%s12 + $0x40] sm:$0xff]
  %v1448 = vld [vmem:[%s12 + $0x48] sm:$0xff]
  %v1449 = vld [vmem:[%s12 + $0x50] sm:$0xff]
  %v1450 = vld [vmem:[%s12 + $0x58] sm:$0xff]
  %v1451 = vld [vmem:[%s15] ss:$4 sm:$0x7]
  %v1453 = vperm.slane %v1451, 0
  %v1454 = vperm.slane %v1451, 1
  %v1455 = vperm.slane %v1451, 2
  %v1460 = vsel %vm99, %v1438, 0
  %1462 = vmatpush.msra.mxu0 0.0
  %1463 = vmatpush.msra.mxu0 0.0
  %1464 = vmatpush.msra.mxu0 0.0
  %1465 = vmatpush.msra.mxu0 0.0
  %1466 = vmatpush.msra.mxu0 0.0
  %1467 = vmatpush.msra.mxu0 0.0
  %1468 = vmatpush.msra.mxu0 0.0
  %1469 = vmatpush.msra.mxu0 0.0
  %1470 = vmatpush.msra.mxu0 0.0
  %1471 = vmatpush.msra.mxu0 0.0
  %1472 = vmatpush.msra.mxu0 0.0
  %1473 = vmatpush.msra.mxu0 0.0
  %1474 = vmatpush.msra.mxu0 %v1448
  %1475 = vmatpush.msra.mxu0 %v1445
  %1476 = vmatpush.msra.mxu0 %v1442
  %1477 = vmatpush.msra.mxu0 %v1439
  %1478 = vmatmul.f32.gmra.mxu0 %v1460
  %v1479 = vpop.f32.mrf.mxu0
  %v1480 = vadd.f32 %v1453, %v1479
  %1481 = vdwg.mxu0
  %1482 = vmatpush.msra.mxu0 0.0
  %1483 = vmatpush.msra.mxu0 0.0
  %1484 = vmatpush.msra.mxu0 0.0
  %1485 = vmatpush.msra.mxu0 0.0
  %1486 = vmatpush.msra.mxu0 0.0
  %1487 = vmatpush.msra.mxu0 0.0
  %1488 = vmatpush.msra.mxu0 0.0
  %1489 = vmatpush.msra.mxu0 0.0
  %1490 = vmatpush.msra.mxu0 0.0
  %1491 = vmatpush.msra.mxu0 0.0
  %1492 = vmatpush.msra.mxu0 0.0
  %1493 = vmatpush.msra.mxu0 0.0
  %1494 = vmatpush.msra.mxu0 %v1449
  %1495 = vmatpush.msra.mxu0 %v1446
  %1496 = vmatpush.msra.mxu0 %v1443
  %1497 = vmatpush.msra.mxu0 %v1440
  %1498 = vmatmul.f32.gmra.mxu0 %v1460
  %v1499 = vpop.f32.mrf.mxu0
  %v1500 = vadd.f32 %v1454, %v1499
  %1501 = vdwg.mxu0
  %1502 = vmatpush.msra.mxu0 0.0
  %1503 = vmatpush.msra.mxu0 0.0
  %1504 = vmatpush.msra.mxu0 0.0
  %1505 = vmatpush.msra.mxu0 0.0
  %1506 = vmatpush.msra.mxu0 0.0
  %1507 = vmatpush.msra.mxu0 0.0
  %1508 = vmatpush.msra.mxu0 0.0
  %1509 = vmatpush.msra.mxu0 0.0
  %1510 = vmatpush.msra.mxu0 0.0
  %1511 = vmatpush.msra.mxu0 0.0
  %1512 = vmatpush.msra.mxu0 0.0
  %1513 = vmatpush.msra.mxu0 0.0
  %1514 = vmatpush.msra.mxu0 %v1450
  %1515 = vmatpush.msra.mxu0 %v1447
  %1516 = vmatpush.msra.mxu0 %v1444
  %1517 = vmatpush.msra.mxu0 %v1441
  %1518 = vmatmul.f32.gmra.mxu0 %v1460
  %v1519 = vpop.f32.mrf.mxu0
  %v1520 = vadd.f32 %v1455, %v1519
  %1521 = vdwg.mxu0
  %vm1522 = vcmask 1043456
  %v1523 = vsel %vm1522, %v1480, 0.0
  %v1524 = vrot.slane %v1523, 4
  %v1525 = vadd.f32 %v1523, %v1524
  %v1526 = vrot.slane %v1525, 2
  %v1527 = vadd.f32 %v1525, %v1526
  %v1528 = vrot.slane %v1527, 1
  %v1529 = vadd.f32 %v1527, %v1528
  %v1530 = vsel %vm1522, %v1500, 0.0
  %v1531 = vrot.slane %v1530, 4
  %v1532 = vadd.f32 %v1530, %v1531
  %v1533 = vrot.slane %v1532, 2
  %v1534 = vadd.f32 %v1532, %v1533
  %v1535 = vrot.slane %v1534, 1
  %v1536 = vadd.f32 %v1534, %v1535
  %vm1537 = vcmask 519168
  %v1538 = vsel %vm1537, %v1520, 0.0
  %v1539 = vrot.slane %v1538, 4
  %v1540 = vadd.f32 %v1538, %v1539
  %v1541 = vrot.slane %v1540, 2
  %v1542 = vadd.f32 %v1540, %v1541
  %v1543 = vrot.slane %v1542, 1
  %v1544 = vadd.f32 %v1542, %v1543
  %v1545 = vrcp.pop 4.0
  %v1546 = vmul.f32 4.0, %v1545
  %v1547 = vsub.f32 1.0, %v1546
  %v1548 = vmul.f32 %v1545, %v1547
  %v1549 = vadd.f32 %v1545, %v1548
  %vm1550 = vweird.f32 %v1545
  %v1551 = vsel %vm1550, %v1545, %v1549
  %v1552 = vmul.f32 %v1529, %v1551
  %v1553 = vmul.f32 %v1536, %v1551
  %v1554 = vmul.f32 %v1544, %v1551
  %v1555 = vsub.f32 %v1480, %v1552
  %v1556 = vsub.f32 %v1500, %v1553
  %v1557 = vsub.f32 %v1520, %v1554
  %v1558 = vmul.f32 %v1555, %v1555
  %v1559 = vmul.f32 %v1556, %v1556
  %v1560 = vmul.f32 %v1557, %v1557
  %v1561 = vsel %vm1522, %v1558, 0.0
  %v1562 = vrot.slane %v1561, 4
  %v1563 = vadd.f32 %v1561, %v1562
  %v1564 = vrot.slane %v1563, 2
  %v1565 = vadd.f32 %v1563, %v1564
  %v1566 = vrot.slane %v1565, 1
  %v1567 = vadd.f32 %v1565, %v1566
  %v1568 = vsel %vm1522, %v1559, 0.0
  %v1569 = vrot.slane %v1568, 4
  %v1570 = vadd.f32 %v1568, %v1569
  %v1571 = vrot.slane %v1570, 2
  %v1572 = vadd.f32 %v1570, %v1571
  %v1573 = vrot.slane %v1572, 1
  %v1574 = vadd.f32 %v1572, %v1573
  %v1575 = vsel %vm1537, %v1560, 0.0
  %v1576 = vrot.slane %v1575, 4
  %v1577 = vadd.f32 %v1575, %v1576
  %v1578 = vrot.slane %v1577, 2
  %v1579 = vadd.f32 %v1577, %v1578
  %v1580 = vrot.slane %v1579, 1
  %v1581 = vadd.f32 %v1579, %v1580
  %v1582 = vmul.f32 %v1567, %v1551
  %v1583 = vmul.f32 %v1574, %v1551
  %v1584 = vmul.f32 %v1581, %v1551
  %v1585 = vadd.f32 %v1582, 1e-05
  %v1586 = vadd.f32 %v1583, 1e-05
  %v1587 = vadd.f32 %v1584, 1e-05
  %v1588 = vrsqrt.pop %v1585
  %v1589 = vmul.f32 %v1588, %v1585
  %v1590 = vmul.f32 %v1589, %v1588
  %v1591 = vmul.f32 0.5, %v1590
  %v1592 = vsub.f32 1.5, %v1591
  %v1593 = vmul.f32 %v1588, %v1592
  %vm1594 = vweird.f32 %v1585
  %vm1595 = vweird.f32 %v1588
  %vm1596 = vmor %vm1594, %vm1595
  %v1597 = vsel %vm1596, %v1588, %v1593
  %v1598 = vrsqrt.pop %v1586
  %v1599 = vmul.f32 %v1598, %v1586
  %v1600 = vmul.f32 %v1599, %v1598
  %v1601 = vmul.f32 0.5, %v1600
  %v1602 = vsub.f32 1.5, %v1601
  %v1603 = vmul.f32 %v1598, %v1602
  %vm1604 = vweird.f32 %v1586
  %vm1605 = vweird.f32 %v1598
  %vm1606 = vmor %vm1604, %vm1605
  %v1607 = vsel %vm1606, %v1598, %v1603
  %v1608 = vrsqrt.pop %v1587
  %v1609 = vmul.f32 %v1608, %v1587
  %v1610 = vmul.f32 %v1609, %v1608
  %v1611 = vmul.f32 0.5, %v1610
  %v1612 = vsub.f32 1.5, %v1611
  %v1613 = vmul.f32 %v1608, %v1612
  %vm1614 = vweird.f32 %v1587
  %vm1615 = vweird.f32 %v1608
  %vm1616 = vmor %vm1614, %vm1615
  %v1617 = vsel %vm1616, %v1608, %v1613
  %v1618 = vmul.f32 %v1555, %v1597
  %v1619 = vmul.f32 %v1556, %v1607
  %v1620 = vmul.f32 %v1557, %v1617
  %s1621 = scalar_lea.vmem %s15, 1
  %v1622 = vld [vmem:[%s1621] ss:$4 sm:$0x7]
  %v1624 = vperm.slane %v1622, 0
  %v1625 = vperm.slane %v1622, 1
  %v1626 = vperm.slane %v1622, 2
  %v1630 = vmul.f32 %v1618, %v1624
  %v1631 = vmul.f32 %v1619, %v1625
  %v1632 = vmul.f32 %v1620, %v1626
  %s1633 = scalar_lea.vmem %s15, 2
  %v1634 = vld [vmem:[%s1633] ss:$4 sm:$0x7]
  %v1636 = vperm.slane %v1634, 0
  %v1637 = vperm.slane %v1634, 1
  %v1638 = vperm.slane %v1634, 2
  %v1642 = vadd.f32 %v1630, %v1636
  %v1643 = vadd.f32 %v1631, %v1637
  %v1644 = vadd.f32 %v1632, %v1638
  %v1645 = vmax.f32 %v1642, 0.0
  %v1646 = vmax.f32 %v1643, 0.0
  %v1647 = vmax.f32 %v1644, 0.0
  %v1648 = vld [vmem:[%s13] sm:$0xff]
  %v1649 = vld [vmem:[%s13 + $0x8] sm:$0xff]
  %v1650 = vld [vmem:[%s13 + $0x10] sm:$0xff]
  %v1651 = vld [vmem:[%s13 + $0x18] sm:$0xff]
  %v1652 = vld [vmem:[%s13 + $0x20] sm:$0xff]
  %v1653 = vld [vmem:[%s13 + $0x28] sm:$0xff]
  %v1654 = vld [vmem:[%s13 + $0x30] sm:$0xff]
  %v1655 = vld [vmem:[%s13 + $0x38] sm:$0xff]
  %v1656 = vld [vmem:[%s13 + $0x40] sm:$0xff]
  %v1657 = vld [vmem:[%s13 + $0x48] sm:$0xff]
  %v1658 = vld [vmem:[%s13 + $0x50] sm:$0xff]
  %v1659 = vld [vmem:[%s13 + $0x58] sm:$0xff]
  %v1660 = vld [vmem:[%s13 + $0x60] sm:$0xff]
  %v1661 = vld [vmem:[%s13 + $0x68] sm:$0xff]
  %v1662 = vld [vmem:[%s13 + $0x70] sm:$0xff]
  %v1663 = vld [vmem:[%s13 + $0x78] sm:$0xff]
  %v1664 = vld [vmem:[%s13 + $0x80] sm:$0xff]
  %v1665 = vld [vmem:[%s13 + $0x88] sm:$0xff]
  %v1666 = vld [vmem:[%s13 + $0x90] sm:$0xff]
  %v1667 = vld [vmem:[%s13 + $0x98] sm:$0xff]
  %v1668 = vld [vmem:[%s13 + $0xa0] sm:$0xff]
  %v1669 = vld [vmem:[%s13 + $0xa8] sm:$0xff]
  %v1670 = vld [vmem:[%s13 + $0xb0] sm:$0xff]
  %v1671 = vld [vmem:[%s13 + $0xb8] sm:$0xff]
  %v1672 = vld [vmem:[%s13 + $0xc0] sm:$0xff]
  %v1673 = vld [vmem:[%s13 + $0xc8] sm:$0xff]
  %v1674 = vld [vmem:[%s13 + $0xd0] sm:$0xff]
  %v1675 = vld [vmem:[%s13 + $0xd8] sm:$0xff]
  %v1676 = vld [vmem:[%s13 + $0xe0] sm:$0xff]
  %v1677 = vld [vmem:[%s13 + $0xe8] sm:$0xff]
  %v1678 = vld [vmem:[%s13 + $0xf0] sm:$0xff]
  %v1679 = vld [vmem:[%s13 + $0xf8] sm:$0xff]
  %v1680 = vld [vmem:[%s13 + $0x100] sm:$0xff]
  %v1681 = vld [vmem:[%s13 + $0x108] sm:$0xff]
  %v1682 = vld [vmem:[%s13 + $0x110] sm:$0xff]
  %v1683 = vld [vmem:[%s13 + $0x118] sm:$0xff]
  %v1684 = vld [vmem:[%s13 + $0x120] sm:$0xff]
  %v1685 = vld [vmem:[%s13 + $0x128] sm:$0xff]
  %v1686 = vld [vmem:[%s13 + $0x130] sm:$0xff]
  %v1687 = vld [vmem:[%s13 + $0x138] sm:$0xff]
  %v1688 = vld [vmem:[%s14 + $0x1] sm:$0x1]
  %v1689 = vperm.slane %v1688, 0
  %v1691 = vsel %vm114, %v1647, 0
  %1693 = vmatpush.msra.mxu0 %v1663
  %1694 = vmatpush.msra.mxu0 %v1662
  %1695 = vmatpush.msra.mxu0 %v1661
  %1696 = vmatpush.msra.mxu0 %v1660
  %1697 = vmatpush.msra.mxu0 %v1659
  %1698 = vmatpush.msra.mxu0 %v1658
  %1699 = vmatpush.msra.mxu0 %v1657
  %1700 = vmatpush.msra.mxu0 %v1656
  %1701 = vmatpush.msra.mxu0 %v1655
  %1702 = vmatpush.msra.mxu0 %v1654
  %1703 = vmatpush.msra.mxu0 %v1653
  %1704 = vmatpush.msra.mxu0 %v1652
  %1705 = vmatpush.msra.mxu0 %v1651
  %1706 = vmatpush.msra.mxu0 %v1650
  %1707 = vmatpush.msra.mxu0 %v1649
  %1708 = vmatpush.msra.mxu0 %v1648
  %1709 = vmatmul.f32.gmra.mxu0 %v1645
  %v1710 = vpop.f32.mrf.mxu0
  %v1711 = vadd.f32 %v1689, %v1710
  %1712 = vdwg.mxu0
  %1713 = vmatpush.msra.mxu0 %v1679
  %1714 = vmatpush.msra.mxu0 %v1678
  %1715 = vmatpush.msra.mxu0 %v1677
  %1716 = vmatpush.msra.mxu0 %v1676
  %1717 = vmatpush.msra.mxu0 %v1675
  %1718 = vmatpush.msra.mxu0 %v1674
  %1719 = vmatpush.msra.mxu0 %v1673
  %1720 = vmatpush.msra.mxu0 %v1672
  %1721 = vmatpush.msra.mxu0 %v1671
  %1722 = vmatpush.msra.mxu0 %v1670
  %1723 = vmatpush.msra.mxu0 %v1669
  %1724 = vmatpush.msra.mxu0 %v1668
  %1725 = vmatpush.msra.mxu0 %v1667
  %1726 = vmatpush.msra.mxu0 %v1666
  %1727 = vmatpush.msra.mxu0 %v1665
  %1728 = vmatpush.msra.mxu0 %v1664
  %1729 = vmatmul.f32.gmra.mxu0 %v1646
  %v1730 = vpop.f32.mrf.mxu0
  %v1731 = vadd.f32 %v1711, %v1730
  %1732 = vdwg.mxu0
  %1733 = vmatpush.msra.mxu0 0.0
  %1734 = vmatpush.msra.mxu0 0.0
  %1735 = vmatpush.msra.mxu0 0.0
  %1736 = vmatpush.msra.mxu0 0.0
  %1737 = vmatpush.msra.mxu0 0.0
  %1738 = vmatpush.msra.mxu0 0.0
  %1739 = vmatpush.msra.mxu0 0.0
  %1740 = vmatpush.msra.mxu0 0.0
  %1741 = vmatpush.msra.mxu0 %v1687
  %1742 = vmatpush.msra.mxu0 %v1686
  %1743 = vmatpush.msra.mxu0 %v1685
  %1744 = vmatpush.msra.mxu0 %v1684
  %1745 = vmatpush.msra.mxu0 %v1683
  %1746 = vmatpush.msra.mxu0 %v1682
  %1747 = vmatpush.msra.mxu0 %v1681
  %1748 = vmatpush.msra.mxu0 %v1680
  %1749 = vmatmul.f32.gmra.mxu0 %v1691
  %v1750 = vpop.f32.mrf.mxu0
  %v1751 = vadd.f32 %v1731, %v1750
  %1752 = vdwg.mxu0
  %1754 = vrot.lane.b32.xlu0 %v1407, 32
  %v1755 = vpop.permute.xlu0 %1754
  %1758 = vrot.lane.b32.xlu0 %v1751, 64
  %v1759 = vpop.permute.xlu0 %1758
  %v1761 = vsel %vm99, %v643, %v1755
  %v1762 = vsel %vm114, %v1761, %v1759
  %v1763 = vld [vmem:[%s16] sm:$0xff]
  %v1764 = vld [vmem:[%s16 + $0x8] sm:$0xff]
  %v1765 = vld [vmem:[%s16 + $0x10] sm:$0xff]
  %v1766 = vld [vmem:[%s16 + $0x18] sm:$0xff]
  %v1767 = vld [vmem:[%s16 + $0x20] sm:$0xff]
  %v1768 = vld [vmem:[%s16 + $0x28] sm:$0xff]
  %v1769 = vld [vmem:[%s16 + $0x30] sm:$0xff]
  %v1770 = vld [vmem:[%s16 + $0x38] sm:$0xff]
  %v1771 = vld [vmem:[%s16 + $0x40] sm:$0xff]
  %v1772 = vld [vmem:[%s16 + $0x48] sm:$0xff]
  %v1773 = vld [vmem:[%s16 + $0x50] sm:$0xff]
  %v1774 = vld [vmem:[%s16 + $0x58] sm:$0xff]
  %v1775 = vld [vmem:[%s17] sm:$0x1]
  %v1777 = vperm.slane %v1775, 0
  %vm1779 = vcmask 785408
  %v1781 = vsel %vm1779, %v1762, 0
  %1783 = vmatpush.msra.mxu0 0.0
  %1784 = vmatpush.msra.mxu0 0.0
  %1785 = vmatpush.msra.mxu0 0.0
  %1786 = vmatpush.msra.mxu0 0.0
  %1787 = vmatpush.msra.mxu0 %v1774
  %1788 = vmatpush.msra.mxu0 %v1773
  %1789 = vmatpush.msra.mxu0 %v1772
  %1790 = vmatpush.msra.mxu0 %v1771
  %1791 = vmatpush.msra.mxu0 %v1770
  %1792 = vmatpush.msra.mxu0 %v1769
  %1793 = vmatpush.msra.mxu0 %v1768
  %1794 = vmatpush.msra.mxu0 %v1767
  %1795 = vmatpush.msra.mxu0 %v1766
  %1796 = vmatpush.msra.mxu0 %v1765
  %1797 = vmatpush.msra.mxu0 %v1764
  %1798 = vmatpush.msra.mxu0 %v1763
  %1799 = vmatmul.f32.gmra.mxu0 %v1781
  %v1800 = vpop.f32.mrf.mxu0
  %v1801 = vadd.f32 %v1777, %v1800
  %1802 = vdwg.mxu0
  %v1803 = vld [vmem:[%s18] sm:$0xff]
  %v1804 = vld [vmem:[%s18 + $0x8] sm:$0xff]
  %v1805 = vld [vmem:[%s18 + $0x10] sm:$0xff]
  %v1806 = vld [vmem:[%s18 + $0x18] sm:$0xff]
  %v1807 = vld [vmem:[%s18 + $0x20] sm:$0xff]
  %v1808 = vld [vmem:[%s18 + $0x28] sm:$0xff]
  %v1809 = vld [vmem:[%s18 + $0x30] sm:$0xff]
  %v1810 = vld [vmem:[%s18 + $0x38] sm:$0xff]
  %v1811 = vld [vmem:[#allocation2] sm:$0x1]
  %v1813 = vperm.slane %v1811, 0
  %v1816 = vsel %vm114, %v1801, 0
  %1818 = vmatpush.msra.mxu0 0.0
  %1819 = vmatpush.msra.mxu0 0.0
  %1820 = vmatpush.msra.mxu0 0.0
  %1821 = vmatpush.msra.mxu0 0.0
  %1822 = vmatpush.msra.mxu0 0.0
  %1823 = vmatpush.msra.mxu0 0.0
  %1824 = vmatpush.msra.mxu0 0.0
  %1825 = vmatpush.msra.mxu0 0.0
  %1826 = vmatpush.msra.mxu0 %v1810
  %1827 = vmatpush.msra.mxu0 %v1809
  %1828 = vmatpush.msra.mxu0 %v1808
  %1829 = vmatpush.msra.mxu0 %v1807
  %1830 = vmatpush.msra.mxu0 %v1806
  %1831 = vmatpush.msra.mxu0 %v1805
  %1832 = vmatpush.msra.mxu0 %v1804
  %1833 = vmatpush.msra.mxu0 %v1803
  %1834 = vmatmul.f32.gmra.mxu0 %v1816
  %v1835 = vpop.f32.mrf.mxu0
  %v1836 = vadd.f32 %v1813, %v1835
  %1837 = vdwg.mxu0
  %v1838 = vmax.f32 %v1836, 0.0
  %vm1839 = vcmask 3072
  %1840 = vst.msk [vmem:[%s20] sm:$0xf] %vm1839, %v1838
  // Predicated region
  $region82: #{tpu_custom_call.1} parent=0 // pred_check
    _
  $region83: #{tpu_custom_call.1} parent=0 // pred_check_branch
    %1842 = sbr.rel (0) target = $region85
  $region84: #{tpu_custom_call.1} parent=0 // pred_region
    _
  $region85: #{tpu_custom_call.1} parent=0 // pred_fallthru
    _
  // Predicated region
  $region86: #{tpu_custom_call.1} parent=0 // pred_check
    _
  $region87: #{tpu_custom_call.1} parent=0 // pred_check_branch
    %1844 = sbr.rel (0) target = $region89
  $region88: #{tpu_custom_call.1} parent=0 // pred_region
    _
  $region89: #{tpu_custom_call.1} parent=0 // pred_fallthru
    _

</llo_original>
